<compile_context>
chip_gen: v7x
topology: tpu7x:2x2x1
jax: 0.10.0
libtpu: 0.0.40
codegen_flags: <defaults>
</compile_context>

<pallas_src>
import functools

import numpy as np

import jax
import jax.numpy as jnp
from jax import lax
from jax.experimental import pallas as pl
from jax.experimental.pallas import tpu as pltpu

# ---------------- config (stand-in for cfg.FAST_RCNN.*) ----------------
DIM_IN = 4
CONV_HEAD_DIM = 32
NUM_STACKED_CONVS = 2
MLP_HEAD_DIM = 64
ROI_RESOLUTION = 8
NUM_ROIS = 2

KH = KW = 3    # 3x3 convs, stride 1, pad 1
LANE = 128


def _round_up(x, m):
    return (x + m - 1) // m * m


# ---------------- fused Pallas kernel ----------------
def _fused_head_kernel(x_ref, *rest, n_rois, h, n_convs, fc_pad):
    """conv3x3+ReLU (xN) -> FC+ReLU, entirely in vregs (no VMEM scratch).

    Layouts (lane-dense):
      x_ref    : (h*n_rois, W*Cin)    rows r = hh*n_rois + n, lanes = (w, c), f32
      conv w_i : (3, W*Cin_i, W*Cout) bf16; one Toeplitz-along-W RHS per vertical tap
      conv b_i : (1, W*Cout)          f32, bias tiled per output column
      fc w     : (h, W*Cout, fc_pad)  bf16; rows in (w, c) lane order, cols 0-padded to 128
      fc b     : (1, fc_pad)          f32
      o_ref    : (n_rois, fc_pad)
    """
    conv_refs = [(rest[2 * i], rest[2 * i + 1]) for i in range(n_convs)]
    wf_ref = rest[2 * n_convs]
    bf_ref = rest[2 * n_convs + 1]
    o_ref = rest[2 * n_convs + 2]

    R = n_rois * h
    act = x_ref[...]                                     # (R, W*Cin) f32, stays in vregs
    for w_ref, b_ref in conv_refs:
        # Vertical taps built in-register: sublane roll + border masks.  With the
        # h-major / roi-minor row layout the only borders are hh==0 and hh==h-1,
        # so no padded-row VMEM copies and no sublane-misaligned masked stores.
        r = lax.broadcasted_iota(jnp.int32, act.shape, 0)
        up = jnp.where(r < n_rois, 0.0,
                       pltpu.roll(act, n_rois, 0))        # in[hh-1] (zero at top edge)
        down = jnp.where(r >= (h - 1) * n_rois, 0.0,
                         pltpu.roll(act, R - n_rois, 0))  # in[hh+1] (zero at bottom edge)

        # One accumulated bf16 MXU matmul per vertical tap (f32 accumulation); the
        # horizontal taps live in the Toeplitz RHS and no contraction column is
        # zero-padding.
        acc = jnp.dot(up.astype(jnp.bfloat16), w_ref[0],
                      preferred_element_type=jnp.float32)
        acc += jnp.dot(act.astype(jnp.bfloat16), w_ref[1],
                       preferred_element_type=jnp.float32)
        acc += jnp.dot(down.astype(jnp.bfloat16), w_ref[2],
                       preferred_element_type=jnp.float32)
        act = jnp.maximum(acc + b_ref[...], 0.0)          # (R, W*Cout) f32

    # FC + ReLU as h accumulated matmuls over contiguous (n_rois, W*Cout) row blocks:
    # no flatten scatter, no flat scratch, and the output is a full 128-lane block.
    y = jnp.zeros((n_rois, fc_pad), jnp.float32)
    for hh in range(h):
        blk = act[hh * n_rois:(hh + 1) * n_rois, :].astype(jnp.bfloat16)
        y += jnp.dot(blk, wf_ref[hh], preferred_element_type=jnp.float32)
    o_ref[...] = jnp.maximum(y + bf_ref[...], 0.0).astype(o_ref.dtype)


# ---------------- wrapper ----------------
def make_forward(n_rois=NUM_ROIS, dim_in=DIM_IN, conv_dim=CONV_HEAD_DIM,
                 n_convs=NUM_STACKED_CONVS, fc_dim=MLP_HEAD_DIM, roi_size=ROI_RESOLUTION):
    assert n_convs >= 1
    h = w = roi_size
    fc_pad = _round_up(fc_dim, LANE)

    kernel = functools.partial(_fused_head_kernel, n_rois=n_rois, h=h,
                               n_convs=n_convs, fc_pad=fc_pad)

    def _full_spec(shape):
        return pl.BlockSpec(shape, lambda i: (0,) * len(shape))

    vmem_limit = 32 * 1024 * 1024   # explicit; fail loudly below rather than spill

    @jax.jit
    def forward(x_nchw, kernel_params):
        conv_ws, conv_bs, fc_w, fc_b = kernel_params
        # NCHW -> (h-major, roi-minor) rows, (w, c) lanes.  Toy-size (2 KB); at scale
        # roi_xform should emit this layout directly to avoid the HBM round trip.
        x_in = jnp.transpose(x_nchw, (2, 0, 3, 1)).reshape(h * n_rois, w * dim_in)
        x_in = x_in.astype(jnp.float32)

        inputs = [x_in]
        for cw, cb in zip(conv_ws, conv_bs):
            inputs += [cw, cb]
        inputs += [fc_w, fc_b]

        n_bytes = sum(int(np.prod(a.shape)) * a.dtype.itemsize for a in inputs)
        assert 2 * n_bytes + 4 * n_rois * fc_pad < vmem_limit, "head does not fit VMEM"

        out = pl.pallas_call(
            kernel,
            out_shape=jax.ShapeDtypeStruct((n_rois, fc_pad), jnp.float32),
            grid=(1,),   # whole head = one fused grid step at toy shapes
            in_specs=[_full_spec(a.shape) for a in inputs],
            out_specs=_full_spec((n_rois, fc_pad)),
            compiler_params=pltpu.CompilerParams(
                dimension_semantics=("arbitrary",),
                vmem_limit_bytes=vmem_limit),
        )(*inputs)
        return out[:, :fc_dim]

    return forward


# ---------------- one-time parameter preparation (PyTorch layout -> kernel layout) ----------------
def _conv_toeplitz_dy(w_oihw, out_w):
    """(Cout, Cin, 3, 3) OIHW -> (3, out_w*Cin, out_w*Cout) bf16.

    rhs[ky, iw*Cin + c, ow*Cout + co] = W[co, c, ky, kx] where iw = ow + kx - 1;
    taps falling on the zero-padding columns get no weight.  No 128-padded blocks,
    so every contraction column is real work.
    """
    w_np = np.asarray(w_oihw, np.float32)
    cout, cin, kh, kw = w_np.shape
    rhs = np.zeros((kh, out_w * cin, out_w * cout), np.float32)
    for ky in range(kh):
        for kx in range(kw):
            wt = w_np[:, :, ky, kx].T                      # (Cin, Cout)
            for ow in range(out_w):
                iw = ow + kx - 1
                if 0 <= iw < out_w:
                    rhs[ky, iw * cin:(iw + 1) * cin, ow * cout:(ow + 1) * cout] = wt
    return jnp.asarray(rhs, jnp.bfloat16)


def prepare_params(conv_ws, conv_bs, fc_w, fc_b,
                   conv_dim=CONV_HEAD_DIM, fc_dim=MLP_HEAD_DIM, roi_size=ROI_RESOLUTION):
    """Done once at init; weights go to bf16 (biases stay f32 for the f32 accumulator)."""
    h = w = roi_size
    fc_pad = _round_up(fc_dim, LANE)
    kconv_ws, kconv_bs = [], []
    for cw, cb in zip(conv_ws, conv_bs):
        kconv_ws.append(_conv_toeplitz_dy(cw, w))
        kconv_bs.append(jnp.asarray(np.tile(np.asarray(cb, np.float32), w))[None, :])
    # fc.weight is (F, C*H*W) over the NCHW flatten; permute/reshape to (h, W*C, F)
    # matching the kernel's per-row (w, c) lane order, then zero-pad F to 128 lanes.
    wf = (np.asarray(fc_w, np.float32)
          .reshape(fc_dim, conv_dim, h, w)
          .transpose(2, 3, 1, 0)                 # (h, w, C, F)
          .reshape(h, w * conv_dim, fc_dim))
    wf_p = np.zeros((h, w * conv_dim, fc_pad), np.float32)
    wf_p[:, :, :fc_dim] = wf
    bf_p = np.zeros((1, fc_pad), np.float32)
    bf_p[0, :fc_dim] = np.asarray(fc_b, np.float32)
    return (tuple(kconv_ws), tuple(kconv_bs),
            jnp.asarray(wf_p, jnp.bfloat16), jnp.asarray(bf_p, jnp.float32))


# ---------------- deterministic parameter init (PyTorch layout, mirrors _init_weights) ----------------
def init_params(key):
    keys = jax.random.split(key, 2 * NUM_STACKED_CONVS + 2)
    conv_ws, conv_bs = [], []
    cin = DIM_IN
    for i in range(NUM_STACKED_CONVS):
        fan_out = KH * KW * CONV_HEAD_DIM                 # MSRAFill ~ He(fan_out)
        std = (2.0 / fan_out) ** 0.5
        conv_ws.append(std * jax.random.normal(
            keys[2 * i], (CONV_HEAD_DIM, cin, KH, KW), jnp.float32))   # OIHW
        # Module inits biases to 0; small nonzero values here so the bias path is verified.
        conv_bs.append(0.02 * jax.random.normal(keys[2 * i + 1], (CONV_HEAD_DIM,), jnp.float32))
        cin = CONV_HEAD_DIM
    k_in = cin * ROI_RESOLUTION * ROI_RESOLUTION
    scale = (1.0 / k_in) ** 0.5                           # XavierFill-style scale
    fc_w = scale * jax.random.normal(keys[-2], (MLP_HEAD_DIM, k_in), jnp.float32)  # (out, in)
    fc_b = 0.02 * jax.random.normal(keys[-1], (MLP_HEAD_DIM,), jnp.float32)
    return conv_ws, conv_bs, fc_w, fc_b


# ---------------- pure-JAX reference for verification ----------------
def ref_forward(x_nchw, conv_ws, conv_bs, fc_w, fc_b):
    x = x_nchw
    for cw, cb in zip(conv_ws, conv_bs):
        x = jax.lax.conv_general_dilated(
            x, cw, window_strides=(1, 1), padding="SAME",
            dimension_numbers=("NCHW", "OIHW", "NCHW"))
        x = jnp.maximum(x + cb[None, :, None, None], 0.0)
    flat = x.reshape(x.shape[0], -1)
    return jnp.maximum(flat @ fc_w.T + fc_b, 0.0)


if __name__ == "__main__":
    key = jax.random.PRNGKey(0)
    k_params, k_x = jax.random.split(key)

    conv_ws, conv_bs, fc_w, fc_b = init_params(k_params)
    kernel_params = prepare_params(conv_ws, conv_bs, fc_w, fc_b)

    # ROI-pooled input (what roi_xform would have produced): (num_rois, dim_in, R, R).
    x = jax.random.normal(
        k_x, (NUM_ROIS, DIM_IN, ROI_RESOLUTION, ROI_RESOLUTION), jnp.float32)

    forward = make_forward()
    out = jax.block_until_ready(forward(x, kernel_params))

    ref = ref_forward(x, conv_ws, conv_bs, fc_w, fc_b)
    assert out.shape == (NUM_ROIS, MLP_HEAD_DIM), out.shape
    max_err = float(jnp.max(jnp.abs(out - ref)))
    # bf16 matmul operands with f32 accumulation -> loosened tolerance vs the f32 reference.
    assert jnp.allclose(out, ref, atol=5e-2, rtol=5e-2), max_err

    print("KERNEL_OK")
</pallas_src>

<mosaic_0001>
module attributes {stable_mosaic.version = 11 : i64} {
  func.func @_fused_head_kernel(%arg0: i32, %arg1: memref<16x32xf32, #tpu.memory_space<vmem>>, %arg2: memref<3x32x256xbf16, #tpu.memory_space<vmem>>, %arg3: memref<1x256xf32, #tpu.memory_space<vmem>>, %arg4: memref<3x256x256xbf16, #tpu.memory_space<vmem>>, %arg5: memref<1x256xf32, #tpu.memory_space<vmem>>, %arg6: memref<8x256x128xbf16, #tpu.memory_space<vmem>>, %arg7: memref<1x128xf32, #tpu.memory_space<vmem>>, %arg8: memref<2x128xf32, #tpu.memory_space<vmem>>) attributes {dimension_semantics = [#tpu.dimension_semantics<arbitrary>], iteration_bounds = array<i64: 1>, scalar_prefetch = 0 : i64, scratch_operands = 0 : i64, tpu.core_type = #tpu.core_type<tc>, window_params = [{pipeline_mode = #tpu.pipeline_mode<synchronous>, transform_indices = @transform_0, window_bounds = array<i64: 16, 32>}, {pipeline_mode = #tpu.pipeline_mode<synchronous>, transform_indices = @transform_1, window_bounds = array<i64: 3, 32, 256>}, {pipeline_mode = #tpu.pipeline_mode<synchronous>, transform_indices = @transform_2, window_bounds = array<i64: 1, 256>}, {pipeline_mode = #tpu.pipeline_mode<synchronous>, transform_indices = @transform_3, window_bounds = array<i64: 3, 256, 256>}, {pipeline_mode = #tpu.pipeline_mode<synchronous>, transform_indices = @transform_4, window_bounds = array<i64: 1, 256>}, {pipeline_mode = #tpu.pipeline_mode<synchronous>, transform_indices = @transform_5, window_bounds = array<i64: 8, 256, 128>}, {pipeline_mode = #tpu.pipeline_mode<synchronous>, transform_indices = @transform_6, window_bounds = array<i64: 1, 128>}, {pipeline_mode = #tpu.pipeline_mode<synchronous>, transform_indices = @transform_7, window_bounds = array<i64: 2, 128>}]} {
    %c0 = arith.constant 0 : index
    %c0_0 = arith.constant 0 : index
    %0 = vector.load %arg1[%c0, %c0_0] : memref<16x32xf32, #tpu.memory_space<vmem>>, vector<16x32xf32>
    %1 = tpu.iota {dimensions = array<i32: 0>} : vector<16x32xi32>
    %c2_i32 = arith.constant 2 : i32
    %2 = vector.broadcast %c2_i32 : i32 to vector<16x32xi32>
    %3 = arith.cmpi slt, %1, %2 : vector<16x32xi32>
    %c2_i32_1 = arith.constant 2 : i32
    %4 = tpu.dynamic_rotate %0 by %c2_i32_1 dim 0 : vector<16x32xf32>, i32 -> vector<16x32xf32>
    %cst = arith.constant 0.000000e+00 : f32
    %5 = vector.broadcast %cst : f32 to vector<16x32xf32>
    %6 = arith.select %3, %5, %4 : vector<16x32xi1>, vector<16x32xf32>
    %c14_i32 = arith.constant 14 : i32
    %7 = vector.broadcast %c14_i32 : i32 to vector<16x32xi32>
    %8 = arith.cmpi sge, %1, %7 : vector<16x32xi32>
    %c14_i32_2 = arith.constant 14 : i32
    %9 = tpu.dynamic_rotate %0 by %c14_i32_2 dim 0 : vector<16x32xf32>, i32 -> vector<16x32xf32>
    %cst_3 = arith.constant 0.000000e+00 : f32
    %10 = vector.broadcast %cst_3 : f32 to vector<16x32xf32>
    %11 = arith.select %8, %10, %9 : vector<16x32xi1>, vector<16x32xf32>
    %12 = arith.truncf %6 : vector<16x32xf32> to vector<16x32xbf16>
    %c0_4 = arith.constant 0 : index
    %c0_5 = arith.constant 0 : index
    %c0_6 = arith.constant 0 : index
    %13 = vector.load %arg2[%c0_4, %c0_5, %c0_6] : memref<3x32x256xbf16, #tpu.memory_space<vmem>>, vector<1x32x256xbf16>
    %14 = vector.shape_cast %13 : vector<1x32x256xbf16> to vector<32x256xbf16>
    %cst_7 = arith.constant dense<0.000000e+00> : vector<16x256xf32>
    %15 = tpu.matmul %12, %14, %cst_7 {dimension_numbers = #tpu.dot_dimension_numbers<[1], [0], [0], [1], [0, 0, 1, 1], [], []>} : vector<16x32xbf16>, vector<32x256xbf16>, vector<16x256xf32> -> vector<16x256xf32>
    %16 = arith.truncf %0 : vector<16x32xf32> to vector<16x32xbf16>
    %c1 = arith.constant 1 : index
    %c0_8 = arith.constant 0 : index
    %c0_9 = arith.constant 0 : index
    %17 = vector.load %arg2[%c1, %c0_8, %c0_9] : memref<3x32x256xbf16, #tpu.memory_space<vmem>>, vector<1x32x256xbf16>
    %18 = vector.shape_cast %17 : vector<1x32x256xbf16> to vector<32x256xbf16>
    %cst_10 = arith.constant dense<0.000000e+00> : vector<16x256xf32>
    %19 = tpu.matmul %16, %18, %cst_10 {dimension_numbers = #tpu.dot_dimension_numbers<[1], [0], [0], [1], [0, 0, 1, 1], [], []>} : vector<16x32xbf16>, vector<32x256xbf16>, vector<16x256xf32> -> vector<16x256xf32>
    %20 = arith.addf %15, %19 : vector<16x256xf32>
    %21 = arith.truncf %11 : vector<16x32xf32> to vector<16x32xbf16>
    %c2 = arith.constant 2 : index
    %c0_11 = arith.constant 0 : index
    %c0_12 = arith.constant 0 : index
    %22 = vector.load %arg2[%c2, %c0_11, %c0_12] : memref<3x32x256xbf16, #tpu.memory_space<vmem>>, vector<1x32x256xbf16>
    %23 = vector.shape_cast %22 : vector<1x32x256xbf16> to vector<32x256xbf16>
    %cst_13 = arith.constant dense<0.000000e+00> : vector<16x256xf32>
    %24 = tpu.matmul %21, %23, %cst_13 {dimension_numbers = #tpu.dot_dimension_numbers<[1], [0], [0], [1], [0, 0, 1, 1], [], []>} : vector<16x32xbf16>, vector<32x256xbf16>, vector<16x256xf32> -> vector<16x256xf32>
    %25 = arith.addf %20, %24 : vector<16x256xf32>
    %c0_14 = arith.constant 0 : index
    %c0_15 = arith.constant 0 : index
    %26 = vector.load %arg3[%c0_14, %c0_15] : memref<1x256xf32, #tpu.memory_space<vmem>>, vector<1x256xf32>
    %27 = vector.broadcast %26 : vector<1x256xf32> to vector<16x256xf32>
    %28 = arith.addf %25, %27 : vector<16x256xf32>
    %cst_16 = arith.constant 0.000000e+00 : f32
    %29 = vector.broadcast %cst_16 : f32 to vector<16x256xf32>
    %30 = arith.maximumf %28, %29 : vector<16x256xf32>
    %31 = tpu.iota {dimensions = array<i32: 0>} : vector<16x256xi32>
    %c2_i32_17 = arith.constant 2 : i32
    %32 = vector.broadcast %c2_i32_17 : i32 to vector<16x256xi32>
    %33 = arith.cmpi slt, %31, %32 : vector<16x256xi32>
    %c2_i32_18 = arith.constant 2 : i32
    %34 = tpu.dynamic_rotate %30 by %c2_i32_18 dim 0 : vector<16x256xf32>, i32 -> vector<16x256xf32>
    %cst_19 = arith.constant 0.000000e+00 : f32
    %35 = vector.broadcast %cst_19 : f32 to vector<16x256xf32>
    %36 = arith.select %33, %35, %34 : vector<16x256xi1>, vector<16x256xf32>
    %c14_i32_20 = arith.constant 14 : i32
    %37 = vector.broadcast %c14_i32_20 : i32 to vector<16x256xi32>
    %38 = arith.cmpi sge, %31, %37 : vector<16x256xi32>
    %c14_i32_21 = arith.constant 14 : i32
    %39 = tpu.dynamic_rotate %30 by %c14_i32_21 dim 0 : vector<16x256xf32>, i32 -> vector<16x256xf32>
    %cst_22 = arith.constant 0.000000e+00 : f32
    %40 = vector.broadcast %cst_22 : f32 to vector<16x256xf32>
    %41 = arith.select %38, %40, %39 : vector<16x256xi1>, vector<16x256xf32>
    %42 = arith.truncf %36 : vector<16x256xf32> to vector<16x256xbf16>
    %c0_23 = arith.constant 0 : index
    %c0_24 = arith.constant 0 : index
    %c0_25 = arith.constant 0 : index
    %43 = vector.load %arg4[%c0_23, %c0_24, %c0_25] : memref<3x256x256xbf16, #tpu.memory_space<vmem>>, vector<1x256x256xbf16>
    %44 = vector.shape_cast %43 : vector<1x256x256xbf16> to vector<256x256xbf16>
    %cst_26 = arith.constant dense<0.000000e+00> : vector<16x256xf32>
    %45 = tpu.matmul %42, %44, %cst_26 {dimension_numbers = #tpu.dot_dimension_numbers<[1], [0], [0], [1], [0, 0, 1, 1], [], []>} : vector<16x256xbf16>, vector<256x256xbf16>, vector<16x256xf32> -> vector<16x256xf32>
    %46 = arith.truncf %30 : vector<16x256xf32> to vector<16x256xbf16>
    %c1_27 = arith.constant 1 : index
    %c0_28 = arith.constant 0 : index
    %c0_29 = arith.constant 0 : index
    %47 = vector.load %arg4[%c1_27, %c0_28, %c0_29] : memref<3x256x256xbf16, #tpu.memory_space<vmem>>, vector<1x256x256xbf16>
    %48 = vector.shape_cast %47 : vector<1x256x256xbf16> to vector<256x256xbf16>
    %cst_30 = arith.constant dense<0.000000e+00> : vector<16x256xf32>
    %49 = tpu.matmul %46, %48, %cst_30 {dimension_numbers = #tpu.dot_dimension_numbers<[1], [0], [0], [1], [0, 0, 1, 1], [], []>} : vector<16x256xbf16>, vector<256x256xbf16>, vector<16x256xf32> -> vector<16x256xf32>
    %50 = arith.addf %45, %49 : vector<16x256xf32>
    %51 = arith.truncf %41 : vector<16x256xf32> to vector<16x256xbf16>
    %c2_31 = arith.constant 2 : index
    %c0_32 = arith.constant 0 : index
    %c0_33 = arith.constant 0 : index
    %52 = vector.load %arg4[%c2_31, %c0_32, %c0_33] : memref<3x256x256xbf16, #tpu.memory_space<vmem>>, vector<1x256x256xbf16>
    %53 = vector.shape_cast %52 : vector<1x256x256xbf16> to vector<256x256xbf16>
    %cst_34 = arith.constant dense<0.000000e+00> : vector<16x256xf32>
    %54 = tpu.matmul %51, %53, %cst_34 {dimension_numbers = #tpu.dot_dimension_numbers<[1], [0], [0], [1], [0, 0, 1, 1], [], []>} : vector<16x256xbf16>, vector<256x256xbf16>, vector<16x256xf32> -> vector<16x256xf32>
    %55 = arith.addf %50, %54 : vector<16x256xf32>
    %c0_35 = arith.constant 0 : index
    %c0_36 = arith.constant 0 : index
    %56 = vector.load %arg5[%c0_35, %c0_36] : memref<1x256xf32, #tpu.memory_space<vmem>>, vector<1x256xf32>
    %57 = vector.broadcast %56 : vector<1x256xf32> to vector<16x256xf32>
    %58 = arith.addf %55, %57 : vector<16x256xf32>
    %cst_37 = arith.constant 0.000000e+00 : f32
    %59 = vector.broadcast %cst_37 : f32 to vector<16x256xf32>
    %60 = arith.maximumf %58, %59 : vector<16x256xf32>
    %cst_38 = arith.constant 0.000000e+00 : f32
    %61 = vector.broadcast %cst_38 : f32 to vector<2x128xf32>
    %62 = vector.extract_strided_slice %60 {offsets = [0, 0], sizes = [2, 256], strides = [1, 1]} : vector<16x256xf32> to vector<2x256xf32>
    %63 = arith.truncf %62 : vector<2x256xf32> to vector<2x256xbf16>
    %c0_39 = arith.constant 0 : index
    %c0_40 = arith.constant 0 : index
    %c0_41 = arith.constant 0 : index
    %64 = vector.load %arg6[%c0_39, %c0_40, %c0_41] : memref<8x256x128xbf16, #tpu.memory_space<vmem>>, vector<1x256x128xbf16>
    %65 = vector.shape_cast %64 : vector<1x256x128xbf16> to vector<256x128xbf16>
    %cst_42 = arith.constant dense<0.000000e+00> : vector<2x128xf32>
    %66 = tpu.matmul %63, %65, %cst_42 {dimension_numbers = #tpu.dot_dimension_numbers<[1], [0], [0], [1], [0, 0, 1, 1], [], []>} : vector<2x256xbf16>, vector<256x128xbf16>, vector<2x128xf32> -> vector<2x128xf32>
    %67 = arith.addf %61, %66 : vector<2x128xf32>
    %68 = vector.extract_strided_slice %60 {offsets = [2, 0], sizes = [2, 256], strides = [1, 1]} : vector<16x256xf32> to vector<2x256xf32>
    %69 = arith.truncf %68 : vector<2x256xf32> to vector<2x256xbf16>
    %c1_43 = arith.constant 1 : index
    %c0_44 = arith.constant 0 : index
    %c0_45 = arith.constant 0 : index
    %70 = vector.load %arg6[%c1_43, %c0_44, %c0_45] : memref<8x256x128xbf16, #tpu.memory_space<vmem>>, vector<1x256x128xbf16>
    %71 = vector.shape_cast %70 : vector<1x256x128xbf16> to vector<256x128xbf16>
    %cst_46 = arith.constant dense<0.000000e+00> : vector<2x128xf32>
    %72 = tpu.matmul %69, %71, %cst_46 {dimension_numbers = #tpu.dot_dimension_numbers<[1], [0], [0], [1], [0, 0, 1, 1], [], []>} : vector<2x256xbf16>, vector<256x128xbf16>, vector<2x128xf32> -> vector<2x128xf32>
    %73 = arith.addf %67, %72 : vector<2x128xf32>
    %74 = vector.extract_strided_slice %60 {offsets = [4, 0], sizes = [2, 256], strides = [1, 1]} : vector<16x256xf32> to vector<2x256xf32>
    %75 = arith.truncf %74 : vector<2x256xf32> to vector<2x256xbf16>
    %c2_47 = arith.constant 2 : index
    %c0_48 = arith.constant 0 : index
    %c0_49 = arith.constant 0 : index
    %76 = vector.load %arg6[%c2_47, %c0_48, %c0_49] : memref<8x256x128xbf16, #tpu.memory_space<vmem>>, vector<1x256x128xbf16>
    %77 = vector.shape_cast %76 : vector<1x256x128xbf16> to vector<256x128xbf16>
    %cst_50 = arith.constant dense<0.000000e+00> : vector<2x128xf32>
    %78 = tpu.matmul %75, %77, %cst_50 {dimension_numbers = #tpu.dot_dimension_numbers<[1], [0], [0], [1], [0, 0, 1, 1], [], []>} : vector<2x256xbf16>, vector<256x128xbf16>, vector<2x128xf32> -> vector<2x128xf32>
    %79 = arith.addf %73, %78 : vector<2x128xf32>
    %80 = vector.extract_strided_slice %60 {offsets = [6, 0], sizes = [2, 256], strides = [1, 1]} : vector<16x256xf32> to vector<2x256xf32>
    %81 = arith.truncf %80 : vector<2x256xf32> to vector<2x256xbf16>
    %c3 = arith.constant 3 : index
    %c0_51 = arith.constant 0 : index
    %c0_52 = arith.constant 0 : index
    %82 = vector.load %arg6[%c3, %c0_51, %c0_52] : memref<8x256x128xbf16, #tpu.memory_space<vmem>>, vector<1x256x128xbf16>
    %83 = vector.shape_cast %82 : vector<1x256x128xbf16> to vector<256x128xbf16>
    %cst_53 = arith.constant dense<0.000000e+00> : vector<2x128xf32>
    %84 = tpu.matmul %81, %83, %cst_53 {dimension_numbers = #tpu.dot_dimension_numbers<[1], [0], [0], [1], [0, 0, 1, 1], [], []>} : vector<2x256xbf16>, vector<256x128xbf16>, vector<2x128xf32> -> vector<2x128xf32>
    %85 = arith.addf %79, %84 : vector<2x128xf32>
    %86 = vector.extract_strided_slice %60 {offsets = [8, 0], sizes = [2, 256], strides = [1, 1]} : vector<16x256xf32> to vector<2x256xf32>
    %87 = arith.truncf %86 : vector<2x256xf32> to vector<2x256xbf16>
    %c4 = arith.constant 4 : index
    %c0_54 = arith.constant 0 : index
    %c0_55 = arith.constant 0 : index
    %88 = vector.load %arg6[%c4, %c0_54, %c0_55] : memref<8x256x128xbf16, #tpu.memory_space<vmem>>, vector<1x256x128xbf16>
    %89 = vector.shape_cast %88 : vector<1x256x128xbf16> to vector<256x128xbf16>
    %cst_56 = arith.constant dense<0.000000e+00> : vector<2x128xf32>
    %90 = tpu.matmul %87, %89, %cst_56 {dimension_numbers = #tpu.dot_dimension_numbers<[1], [0], [0], [1], [0, 0, 1, 1], [], []>} : vector<2x256xbf16>, vector<256x128xbf16>, vector<2x128xf32> -> vector<2x128xf32>
    %91 = arith.addf %85, %90 : vector<2x128xf32>
    %92 = vector.extract_strided_slice %60 {offsets = [10, 0], sizes = [2, 256], strides = [1, 1]} : vector<16x256xf32> to vector<2x256xf32>
    %93 = arith.truncf %92 : vector<2x256xf32> to vector<2x256xbf16>
    %c5 = arith.constant 5 : index
    %c0_57 = arith.constant 0 : index
    %c0_58 = arith.constant 0 : index
    %94 = vector.load %arg6[%c5, %c0_57, %c0_58] : memref<8x256x128xbf16, #tpu.memory_space<vmem>>, vector<1x256x128xbf16>
    %95 = vector.shape_cast %94 : vector<1x256x128xbf16> to vector<256x128xbf16>
    %cst_59 = arith.constant dense<0.000000e+00> : vector<2x128xf32>
    %96 = tpu.matmul %93, %95, %cst_59 {dimension_numbers = #tpu.dot_dimension_numbers<[1], [0], [0], [1], [0, 0, 1, 1], [], []>} : vector<2x256xbf16>, vector<256x128xbf16>, vector<2x128xf32> -> vector<2x128xf32>
    %97 = arith.addf %91, %96 : vector<2x128xf32>
    %98 = vector.extract_strided_slice %60 {offsets = [12, 0], sizes = [2, 256], strides = [1, 1]} : vector<16x256xf32> to vector<2x256xf32>
    %99 = arith.truncf %98 : vector<2x256xf32> to vector<2x256xbf16>
    %c6 = arith.constant 6 : index
    %c0_60 = arith.constant 0 : index
    %c0_61 = arith.constant 0 : index
    %100 = vector.load %arg6[%c6, %c0_60, %c0_61] : memref<8x256x128xbf16, #tpu.memory_space<vmem>>, vector<1x256x128xbf16>
    %101 = vector.shape_cast %100 : vector<1x256x128xbf16> to vector<256x128xbf16>
    %cst_62 = arith.constant dense<0.000000e+00> : vector<2x128xf32>
    %102 = tpu.matmul %99, %101, %cst_62 {dimension_numbers = #tpu.dot_dimension_numbers<[1], [0], [0], [1], [0, 0, 1, 1], [], []>} : vector<2x256xbf16>, vector<256x128xbf16>, vector<2x128xf32> -> vector<2x128xf32>
    %103 = arith.addf %97, %102 : vector<2x128xf32>
    %104 = vector.extract_strided_slice %60 {offsets = [14, 0], sizes = [2, 256], strides = [1, 1]} : vector<16x256xf32> to vector<2x256xf32>
    %105 = arith.truncf %104 : vector<2x256xf32> to vector<2x256xbf16>
    %c7 = arith.constant 7 : index
    %c0_63 = arith.constant 0 : index
    %c0_64 = arith.constant 0 : index
    %106 = vector.load %arg6[%c7, %c0_63, %c0_64] : memref<8x256x128xbf16, #tpu.memory_space<vmem>>, vector<1x256x128xbf16>
    %107 = vector.shape_cast %106 : vector<1x256x128xbf16> to vector<256x128xbf16>
    %cst_65 = arith.constant dense<0.000000e+00> : vector<2x128xf32>
    %108 = tpu.matmul %105, %107, %cst_65 {dimension_numbers = #tpu.dot_dimension_numbers<[1], [0], [0], [1], [0, 0, 1, 1], [], []>} : vector<2x256xbf16>, vector<256x128xbf16>, vector<2x128xf32> -> vector<2x128xf32>
    %109 = arith.addf %103, %108 : vector<2x128xf32>
    %c0_66 = arith.constant 0 : index
    %c0_67 = arith.constant 0 : index
    %110 = vector.load %arg7[%c0_66, %c0_67] : memref<1x128xf32, #tpu.memory_space<vmem>>, vector<1x128xf32>
    %111 = vector.broadcast %110 : vector<1x128xf32> to vector<2x128xf32>
    %112 = arith.addf %109, %111 : vector<2x128xf32>
    %cst_68 = arith.constant 0.000000e+00 : f32
    %113 = vector.broadcast %cst_68 : f32 to vector<2x128xf32>
    %114 = arith.maximumf %112, %113 : vector<2x128xf32>
    %c0_69 = arith.constant 0 : index
    %c0_70 = arith.constant 0 : index
    %115 = vector.load %arg8[%c0_69, %c0_70] : memref<2x128xf32, #tpu.memory_space<vmem>>, vector<2x128xf32>
    tpu.vector_store %arg8[%c0_69, %c0_70], %114 {strides = array<i32>} : memref<2x128xf32, #tpu.memory_space<vmem>>, vector<2x128xf32>,
    return
  }
  func.func @transform_0(%arg0: i32) -> (i32, i32) {
    %c0_i32 = arith.constant 0 : i32
    %c0_i32_0 = arith.constant 0 : i32
    %c0_i32_1 = arith.constant 0 : i32
    return %c0_i32, %c0_i32_0 : i32, i32
  }
  func.func @transform_1(%arg0: i32) -> (i32, i32, i32) {
    %c0_i32 = arith.constant 0 : i32
    %c0_i32_0 = arith.constant 0 : i32
    %c0_i32_1 = arith.constant 0 : i32
    %c0_i32_2 = arith.constant 0 : i32
    return %c0_i32, %c0_i32_0, %c0_i32_1 : i32, i32, i32
  }
  func.func @transform_2(%arg0: i32) -> (i32, i32) {
    %c0_i32 = arith.constant 0 : i32
    %c0_i32_0 = arith.constant 0 : i32
    %c0_i32_1 = arith.constant 0 : i32
    return %c0_i32, %c0_i32_0 : i32, i32
  }
  func.func @transform_3(%arg0: i32) -> (i32, i32, i32) {
    %c0_i32 = arith.constant 0 : i32
    %c0_i32_0 = arith.constant 0 : i32
    %c0_i32_1 = arith.constant 0 : i32
    %c0_i32_2 = arith.constant 0 : i32
    return %c0_i32, %c0_i32_0, %c0_i32_1 : i32, i32, i32
  }
  func.func @transform_4(%arg0: i32) -> (i32, i32) {
    %c0_i32 = arith.constant 0 : i32
    %c0_i32_0 = arith.constant 0 : i32
    %c0_i32_1 = arith.constant 0 : i32
    return %c0_i32, %c0_i32_0 : i32, i32
  }
  func.func @transform_5(%arg0: i32) -> (i32, i32, i32) {
    %c0_i32 = arith.constant 0 : i32
    %c0_i32_0 = arith.constant 0 : i32
    %c0_i32_1 = arith.constant 0 : i32
    %c0_i32_2 = arith.constant 0 : i32
    return %c0_i32, %c0_i32_0, %c0_i32_1 : i32, i32, i32
  }
  func.func @transform_6(%arg0: i32) -> (i32, i32) {
    %c0_i32 = arith.constant 0 : i32
    %c0_i32_0 = arith.constant 0 : i32
    %c0_i32_1 = arith.constant 0 : i32
    return %c0_i32, %c0_i32_0 : i32, i32
  }
  func.func @transform_7(%arg0: i32) -> (i32, i32) {
    %c0_i32 = arith.constant 0 : i32
    %c0_i32_0 = arith.constant 0 : i32
    %c0_i32_1 = arith.constant 0 : i32
    return %c0_i32, %c0_i32_0 : i32, i32
  }
}

</mosaic_0001>

<llo_original>
// kernel: forward.1
$region0: #{forward.1}
  #allocation0 [shape = 'u32[]', space=smem, size = 0x4, offset = 0x4, fixed_abs, tag = 'smem constant byte address 0x4 - core index']
  #allocation1 [shape = 'u32[144,128]{1,0:T(1,128)}', space=vmem, size = 0x12000, scoped, tag = 'internal scratch']
  %s0 = inlined_call_operand.vmem [shape: f32[16,32], index: 0, kind: input, shape index: {}]
  %s1 = inlined_call_operand.vmem [shape: bf16[3,32,256], index: 1, kind: input, shape index: {}]
  %s2 = inlined_call_operand.vmem [shape: f32[1,256], index: 2, kind: input, shape index: {}]
  %s3 = inlined_call_operand.hbm [shape: bf16[3,256,256], index: 3, kind: input, shape index: {}]
  %s4 = inlined_call_operand.vmem [shape: f32[1,256], index: 4, kind: input, shape index: {}]
  %s5 = inlined_call_operand.hbm [shape: bf16[8,256,128], index: 5, kind: input, shape index: {}]
  %s6 = inlined_call_operand.vmem [shape: f32[1,128], index: 6, kind: input, shape index: {}]
  %s7 = inlined_call_operand.hbm [shape: f32[2,128], index: 7, kind: output, shape index: {}]
  %s8 = sld [smem:[#allocation0]]
  $region46: #{forward.1} parent=0
    _
  %s10 = ssub.s32 1, %s8
  %s11 = scalar_select 0, %s10, %s8
  $region1: #{forward.1} parent=0
    #allocation2 [shape = 'u8[393216]{0}', space=vmem, size = 0x60000, scoped, tag = 'input window, operand 3, single buffered']
    #allocation3 [shape = 's32[1]{0}', space=sflag, size = 0x4, scoped, tag = 'scoped memory for forward.1']
    #allocation4 [shape = 's32[1]{0}', space=sflag, size = 0x4, scoped, tag = 'scoped memory for forward.1']
    #allocation5 [shape = 'u8[524288]{0}', space=vmem, size = 0x80000, scoped, tag = 'input window, operand 5, single buffered']
    #allocation6 [shape = 's32[1]{0}', space=sflag, size = 0x4, scoped, tag = 'scoped memory for forward.1']
    #allocation7 [shape = 'u8[1024]{0}', space=vmem, size = 0x400, scoped, tag = 'output window, operand 0, single buffered']
    %12 = vsyncpa [#allocation3], 0
    %13 = vsyncpa [#allocation6], 0
    %14 = vsyncpa [#allocation4], 0
    // Predicated region
    $region2: #{forward.1} parent=1 // pred_check
      _
    $region3: #{forward.1} parent=1 // pred_check_branch
      %16 = sbr.rel (0) target = $region5
    $region4: #{forward.1} parent=1 // pred_region
      _
    $region5: #{forward.1} parent=1 // pred_fallthru
      _
    // Predicated region
    $region6: #{forward.1} parent=1 // pred_check
      _
    $region7: #{forward.1} parent=1 // pred_check_branch
      %18 = sbr.rel (0) target = $region9
    $region8: #{forward.1} parent=1 // pred_region
      _
    $region9: #{forward.1} parent=1 // pred_fallthru
      _
    // Predicated region
    $region10: #{forward.1} parent=1 // pred_check
      _
    $region11: #{forward.1} parent=1 // pred_check_branch
      %20 = sbr.rel (0) target = $region13
    $region12: #{forward.1} parent=1 // pred_region
      _
    $region13: #{forward.1} parent=1 // pred_fallthru
      _
    // Predicated region
    $region14: #{forward.1} parent=1 // pred_check
      _
    $region15: #{forward.1} parent=1 // pred_check_branch
      %22 = sbr.rel (0) target = $region17
    $region16: #{forward.1} parent=1 // pred_region
      %s24 = ssub.s32 12288, 12288
      %25 = vsyncadd [#allocation3], %s24
      %s26 = sshll.u32 [#allocation2], 4
      %s27 = int_to_ptr.vmem [resolvable:$true] %s26
      %32 = dma.hbm_to_vmem [thread:$0]  %s3, 12288, %s27, [#allocation3], 128, 128, 8
    $region17: #{forward.1} parent=1 // pred_fallthru
      _
    // Predicated region
    $region18: #{forward.1} parent=1 // pred_check
      _
    $region19: #{forward.1} parent=1 // pred_check_branch
      %34 = sbr.rel (0) target = $region21
    $region20: #{forward.1} parent=1 // pred_region
      _
    $region21: #{forward.1} parent=1 // pred_fallthru
      _
    // Predicated region
    $region22: #{forward.1} parent=1 // pred_check
      _
    $region23: #{forward.1} parent=1 // pred_check_branch
      %36 = sbr.rel (0) target = $region25
    $region24: #{forward.1} parent=1 // pred_region
      %s38 = ssub.s32 16384, 16384
      %39 = vsyncadd [#allocation6], %s38
      %s40 = sshll.u32 [#allocation5], 4
      %s41 = int_to_ptr.vmem [resolvable:$true] %s40
      %46 = dma.hbm_to_vmem [thread:$0]  %s5, 16384, %s41, [#allocation6], 64, 64, 4
    $region25: #{forward.1} parent=1 // pred_fallthru
      _
    // Predicated region
    $region26: #{forward.1} parent=1 // pred_check
      _
    $region27: #{forward.1} parent=1 // pred_check_branch
      %48 = sbr.rel (0) target = $region29
    $region28: #{forward.1} parent=1 // pred_region
      _
    $region29: #{forward.1} parent=1 // pred_fallthru
      _
    // Predicated region
    $region30: #{forward.1} parent=1 // pred_check
      _
    $region31: #{forward.1} parent=1 // pred_check_branch
      %50 = sbr.rel (0) target = $region33
    $region32: #{forward.1} parent=1 // pred_region
      %51 = dma.done [#allocation3], 12288
    $region33: #{forward.1} parent=1 // pred_fallthru
      _
    // Predicated region
    $region34: #{forward.1} parent=1 // pred_check
      _
    $region35: #{forward.1} parent=1 // pred_check_branch
      %53 = sbr.rel (0) target = $region37
    $region36: #{forward.1} parent=1 // pred_region
      %54 = dma.done [#allocation6], 16384
    $region37: #{forward.1} parent=1 // pred_fallthru
      _
    %v56 = vld [vmem:[%s0] sm:$0xff]
    %v57 = vld [vmem:[%s0 + $0x8] sm:$0xff]
    %v58 = vlaneseq
    %v59 = vshrl.u32 %v58, 7
    %v60 = vadd.s32 %v59, 8
    %vm61 = vcmp.lt.s32.totalorder %v59, 2
    %vm62 = vcmp.lt.s32.totalorder %v60, 2
    %v63 = vrot.slane %v56, 6
    %v64 = vrot.slane %v57, 6
    %v65 = vsel %vm61, %v63, %v64
    %v66 = vsel %vm61, %v64, %v63
    %v67 = vsel %vm61, 0.0, %v66
    %v68 = vsel %vm62, 0.0, %v65
    %vm69 = vcmp.ge.s32.totalorder %v59, 14
    %vm70 = vcmp.ge.s32.totalorder %v60, 14
    %v71 = vrot.slane %v56, 2
    %v72 = vrot.slane %v57, 2
    %vm73 = vcmp.lt.s32.totalorder %v59, 6
    %v74 = vsel %vm73, %v71, %v72
    %v75 = vsel %vm73, %v72, %v71
    %v76 = vsel %vm69, 0.0, %v74
    %v77 = vsel %vm70, 0.0, %v75
    %v78 = vpack.c.bf16 %v68, %v67
    %v79 = vld [vmem:[%s1] sm:$0xff]
    %v80 = vld [vmem:[%s1 + $0x8] sm:$0xff]
    %v81 = vld [vmem:[%s1 + $0x10] sm:$0xff]
    %v82 = vld [vmem:[%s1 + $0x18] sm:$0xff]
    %v83 = vpack.c.bf16 %v57, %v56
    %s84 = scalar_lea.vmem %s1, 32
    %v85 = vld [vmem:[%s84] sm:$0xff]
    %v86 = vld [vmem:[%s84 + $0x8] sm:$0xff]
    %v87 = vld [vmem:[%s84 + $0x10] sm:$0xff]
    %v88 = vld [vmem:[%s84 + $0x18] sm:$0xff]
    %v93 = vunpack.c.l.b16 %v85
    %v94 = vunpack.c.h.b16 %v85
    %v95 = vunpack.c.l.b16 %v86
    %v96 = vunpack.c.h.b16 %v86
    %v97 = vunpack.c.l.b16 %v87
    %v98 = vunpack.c.h.b16 %v87
    %v99 = vunpack.c.l.b16 %v88
    %v100 = vunpack.c.h.b16 %v88
    %v101 = vpack.c.b16 %v95, %v93
    %v102 = vpack.c.b16 %v96, %v94
    %v103 = vpack.c.b16 %v99, %v97
    %v104 = vpack.c.b16 %v100, %v98
    %vm109 = vcmask 261120
    %v111 = vsel %vm109, %v83, 0
    %113 = vmatprep.subr.bf16.mxu0 %v102
    %114 = vmatpush1.bf16.msra.mxu0 %v101
    %115 = vmatprep.subr.bf16.mxu0 %v104
    %116 = vmatpush1.bf16.msra.mxu0 %v103
    %117 = vmatprep.subr.bf16.mxu0 0
    %118 = vmatpush1.bf16.msra.mxu0 0
    %119 = vmatprep.subr.bf16.mxu0 0
    %120 = vmatpush1.bf16.msra.mxu0 0
    %121 = vmatprep.subr.bf16.mxu0 0
    %122 = vmatpush1.bf16.msra.mxu0 0
    %123 = vmatprep.subr.bf16.mxu0 0
    %124 = vmatpush1.bf16.msra.mxu0 0
    %125 = vmatprep.subr.bf16.mxu0 0
    %126 = vmatpush1.bf16.msra.mxu0 0
    %127 = vmatprep.subr.bf16.mxu0 0
    %128 = vmatpush1.bf16.msra.mxu0 0
    %129 = vmatprep.subr.bf16.mxu0 0
    %130 = vmatpush1.bf16.msra.mxu0 0
    %131 = vmatprep.subr.bf16.mxu0 0
    %132 = vmatpush1.bf16.msra.mxu0 0
    %133 = vmatprep.subr.bf16.mxu0 0
    %134 = vmatpush1.bf16.msra.mxu0 0
    %135 = vmatprep.subr.bf16.mxu0 0
    %136 = vmatpush1.bf16.msra.mxu0 0
    %137 = vmatprep.subr.bf16.mxu0 0
    %138 = vmatpush1.bf16.msra.mxu0 0
    %139 = vmatprep.subr.bf16.mxu0 0
    %140 = vmatpush1.bf16.msra.mxu0 0
    %141 = vmatprep.subr.bf16.mxu0 0
    %142 = vmatpush1.bf16.msra.mxu0 0
    %143 = vmatprep.subr.bf16.mxu0 0
    %144 = vmatpush1.bf16.msra.mxu0 0
    %145 = vmatprep.mubr.bf16.mxu0 0
    %146 = vmatmul.mubr.bf16.gmra.mrb[0].mxu0 %v111
    %v147 = vpop.f32.mrb[0].mxu0
    %v148 = vadd.f32 0.0, %v147
    %v149 = vpop.f32.mrb[0].mxu0
    %v150 = vadd.f32 0.0, %v149
    %v151 = vpop.f32.mrb[0].mxu0
    %v152 = vadd.f32 0.0, %v151
    %v153 = vpop.f32.mrb[0].mxu0
    %v154 = vadd.f32 0.0, %v153
    %155 = vdwg.mxu0
    %v160 = vunpack.c.l.b16 %v79
    %v161 = vunpack.c.h.b16 %v79
    %v162 = vunpack.c.l.b16 %v80
    %v163 = vunpack.c.h.b16 %v80
    %v164 = vunpack.c.l.b16 %v81
    %v165 = vunpack.c.h.b16 %v81
    %v166 = vunpack.c.l.b16 %v82
    %v167 = vunpack.c.h.b16 %v82
    %v168 = vpack.c.b16 %v162, %v160
    %v169 = vpack.c.b16 %v163, %v161
    %v170 = vpack.c.b16 %v166, %v164
    %v171 = vpack.c.b16 %v167, %v165
    %v177 = vsel %vm109, %v78, 0
    %179 = vmatprep.subr.bf16.mxu0 %v169
    %180 = vmatpush1.bf16.msra.mxu0 %v168
    %181 = vmatprep.subr.bf16.mxu0 %v171
    %182 = vmatpush1.bf16.msra.mxu0 %v170
    %183 = vmatprep.subr.bf16.mxu0 0
    %184 = vmatpush1.bf16.msra.mxu0 0
    %185 = vmatprep.subr.bf16.mxu0 0
    %186 = vmatpush1.bf16.msra.mxu0 0
    %187 = vmatprep.subr.bf16.mxu0 0
    %188 = vmatpush1.bf16.msra.mxu0 0
    %189 = vmatprep.subr.bf16.mxu0 0
    %190 = vmatpush1.bf16.msra.mxu0 0
    %191 = vmatprep.subr.bf16.mxu0 0
    %192 = vmatpush1.bf16.msra.mxu0 0
    %193 = vmatprep.subr.bf16.mxu0 0
    %194 = vmatpush1.bf16.msra.mxu0 0
    %195 = vmatprep.subr.bf16.mxu0 0
    %196 = vmatpush1.bf16.msra.mxu0 0
    %197 = vmatprep.subr.bf16.mxu0 0
    %198 = vmatpush1.bf16.msra.mxu0 0
    %199 = vmatprep.subr.bf16.mxu0 0
    %200 = vmatpush1.bf16.msra.mxu0 0
    %201 = vmatprep.subr.bf16.mxu0 0
    %202 = vmatpush1.bf16.msra.mxu0 0
    %203 = vmatprep.subr.bf16.mxu0 0
    %204 = vmatpush1.bf16.msra.mxu0 0
    %205 = vmatprep.subr.bf16.mxu0 0
    %206 = vmatpush1.bf16.msra.mxu0 0
    %207 = vmatprep.subr.bf16.mxu0 0
    %208 = vmatpush1.bf16.msra.mxu0 0
    %209 = vmatprep.subr.bf16.mxu0 0
    %210 = vmatpush1.bf16.msra.mxu0 0
    %211 = vmatprep.mubr.bf16.mxu0 0
    %212 = vmatmul.mubr.bf16.gmra.mrb[0].mxu0 %v177
    %v213 = vpop.f32.mrb[0].mxu0
    %v214 = vadd.f32 %v148, %v213
    %v215 = vpop.f32.mrb[0].mxu0
    %v216 = vadd.f32 %v150, %v215
    %v217 = vpop.f32.mrb[0].mxu0
    %v218 = vadd.f32 %v152, %v217
    %v219 = vpop.f32.mrb[0].mxu0
    %v220 = vadd.f32 %v154, %v219
    %221 = vdwg.mxu0
    %v222 = vpack.c.bf16 %v77, %v76
    %s223 = scalar_lea.vmem %s1, 64
    %v224 = vld [vmem:[%s223] sm:$0xff]
    %v225 = vld [vmem:[%s223 + $0x8] sm:$0xff]
    %v226 = vld [vmem:[%s223 + $0x10] sm:$0xff]
    %v227 = vld [vmem:[%s223 + $0x18] sm:$0xff]
    %v232 = vunpack.c.l.b16 %v224
    %v233 = vunpack.c.h.b16 %v224
    %v234 = vunpack.c.l.b16 %v225
    %v235 = vunpack.c.h.b16 %v225
    %v236 = vunpack.c.l.b16 %v226
    %v237 = vunpack.c.h.b16 %v226
    %v238 = vunpack.c.l.b16 %v227
    %v239 = vunpack.c.h.b16 %v227
    %v240 = vpack.c.b16 %v234, %v232
    %v241 = vpack.c.b16 %v235, %v233
    %v242 = vpack.c.b16 %v238, %v236
    %v243 = vpack.c.b16 %v239, %v237
    %v249 = vsel %vm109, %v222, 0
    %251 = vmatprep.subr.bf16.mxu0 %v241
    %252 = vmatpush1.bf16.msra.mxu0 %v240
    %253 = vmatprep.subr.bf16.mxu0 %v243
    %254 = vmatpush1.bf16.msra.mxu0 %v242
    %255 = vmatprep.subr.bf16.mxu0 0
    %256 = vmatpush1.bf16.msra.mxu0 0
    %257 = vmatprep.subr.bf16.mxu0 0
    %258 = vmatpush1.bf16.msra.mxu0 0
    %259 = vmatprep.subr.bf16.mxu0 0
    %260 = vmatpush1.bf16.msra.mxu0 0
    %261 = vmatprep.subr.bf16.mxu0 0
    %262 = vmatpush1.bf16.msra.mxu0 0
    %263 = vmatprep.subr.bf16.mxu0 0
    %264 = vmatpush1.bf16.msra.mxu0 0
    %265 = vmatprep.subr.bf16.mxu0 0
    %266 = vmatpush1.bf16.msra.mxu0 0
    %267 = vmatprep.subr.bf16.mxu0 0
    %268 = vmatpush1.bf16.msra.mxu0 0
    %269 = vmatprep.subr.bf16.mxu0 0
    %270 = vmatpush1.bf16.msra.mxu0 0
    %271 = vmatprep.subr.bf16.mxu0 0
    %272 = vmatpush1.bf16.msra.mxu0 0
    %273 = vmatprep.subr.bf16.mxu0 0
    %274 = vmatpush1.bf16.msra.mxu0 0
    %275 = vmatprep.subr.bf16.mxu0 0
    %276 = vmatpush1.bf16.msra.mxu0 0
    %277 = vmatprep.subr.bf16.mxu0 0
    %278 = vmatpush1.bf16.msra.mxu0 0
    %279 = vmatprep.subr.bf16.mxu0 0
    %280 = vmatpush1.bf16.msra.mxu0 0
    %281 = vmatprep.subr.bf16.mxu0 0
    %282 = vmatpush1.bf16.msra.mxu0 0
    %283 = vmatprep.mubr.bf16.mxu0 0
    %284 = vmatmul.mubr.bf16.gmra.mrb[0].mxu0 %v249
    %v285 = vpop.f32.mrb[0].mxu0
    %v286 = vadd.f32 0.0, %v285
    %v287 = vpop.f32.mrb[0].mxu0
    %v288 = vadd.f32 0.0, %v287
    %v289 = vpop.f32.mrb[0].mxu0
    %v290 = vadd.f32 0.0, %v289
    %v291 = vpop.f32.mrb[0].mxu0
    %v292 = vadd.f32 0.0, %v291
    %293 = vdwg.mxu0
    %v294 = vadd.f32 %v214, %v286
    %v295 = vadd.f32 %v216, %v288
    %v296 = vadd.f32 %v218, %v290
    %v297 = vadd.f32 %v220, %v292
    %v298 = vld [vmem:[%s2] sm:$0x3]
    %v300 = vlaneseq
    %v301 = vshrl.u32 %v300, 7
    %v302 = vsub.s32 0, %v301
    %v303 = vrot.slane %v298, %v302
    %v304 = vlaneseq
    %v305 = vshrl.u32 %v304, 7
    %v306 = vsub.s32 1, %v305
    %v307 = vrot.slane %v298, %v306
    %v310 = vadd.f32 %v294, %v303
    %v311 = vadd.f32 %v295, %v307
    %v312 = vadd.f32 %v296, %v303
    %v313 = vadd.f32 %v297, %v307
    %v314 = vmax.f32 %v310, 0.0
    %v315 = vmax.f32 %v311, 0.0
    %v316 = vmax.f32 %v312, 0.0
    %v317 = vmax.f32 %v313, 0.0
    %v318 = vrot.slane %v314, 6
    %v319 = vrot.slane %v315, 6
    %v320 = vrot.slane %v316, 6
    %v321 = vrot.slane %v317, 6
    %v322 = vsel %vm61, %v318, %v320
    %v323 = vsel %vm61, %v319, %v321
    %v324 = vsel %vm61, %v320, %v318
    %v325 = vsel %vm61, %v321, %v319
    %v326 = vsel %vm61, 0.0, %v324
    %v327 = vsel %vm61, 0.0, %v325
    %v328 = vsel %vm62, 0.0, %v322
    %v329 = vsel %vm62, 0.0, %v323
    %v330 = vrot.slane %v314, 2
    %v331 = vrot.slane %v315, 2
    %v332 = vrot.slane %v316, 2
    %v333 = vrot.slane %v317, 2
    %v334 = vsel %vm73, %v330, %v332
    %v335 = vsel %vm73, %v331, %v333
    %v336 = vsel %vm73, %v332, %v330
    %v337 = vsel %vm73, %v333, %v331
    %v338 = vsel %vm69, 0.0, %v334
    %v339 = vsel %vm69, 0.0, %v335
    %v340 = vsel %vm70, 0.0, %v336
    %v341 = vsel %vm70, 0.0, %v337
    %v342 = vpack.c.bf16 %v328, %v326
    %v343 = vpack.c.bf16 %v329, %v327
    %v344 = vld [vmem:[#allocation2] sm:$0xff]
    %v345 = vld [vmem:[#allocation2 + $0x8] sm:$0xff]
    %v346 = vld [vmem:[#allocation2 + $0x10] sm:$0xff]
    %v347 = vld [vmem:[#allocation2 + $0x18] sm:$0xff]
    %v348 = vld [vmem:[#allocation2 + $0x20] sm:$0xff]
    %v349 = vld [vmem:[#allocation2 + $0x28] sm:$0xff]
    %v350 = vld [vmem:[#allocation2 + $0x30] sm:$0xff]
    %v351 = vld [vmem:[#allocation2 + $0x38] sm:$0xff]
    %v352 = vld [vmem:[#allocation2 + $0x40] sm:$0xff]
    %v353 = vld [vmem:[#allocation2 + $0x48] sm:$0xff]
    %v354 = vld [vmem:[#allocation2 + $0x50] sm:$0xff]
    %v355 = vld [vmem:[#allocation2 + $0x58] sm:$0xff]
    %v356 = vld [vmem:[#allocation2 + $0x60] sm:$0xff]
    %v357 = vld [vmem:[#allocation2 + $0x68] sm:$0xff]
    %v358 = vld [vmem:[#allocation2 + $0x70] sm:$0xff]
    %v359 = vld [vmem:[#allocation2 + $0x78] sm:$0xff]
    %v360 = vld [vmem:[#allocation2 + $0x80] sm:$0xff]
    %v361 = vld [vmem:[#allocation2 + $0x88] sm:$0xff]
    %v362 = vld [vmem:[#allocation2 + $0x90] sm:$0xff]
    %v363 = vld [vmem:[#allocation2 + $0x98] sm:$0xff]
    %v364 = vld [vmem:[#allocation2 + $0xa0] sm:$0xff]
    %v365 = vld [vmem:[#allocation2 + $0xa8] sm:$0xff]
    %v366 = vld [vmem:[#allocation2 + $0xb0] sm:$0xff]
    %v367 = vld [vmem:[#allocation2 + $0xb8] sm:$0xff]
    %v368 = vld [vmem:[#allocation2 + $0xc0] sm:$0xff]
    %v369 = vld [vmem:[#allocation2 + $0xc8] sm:$0xff]
    %v370 = vld [vmem:[#allocation2 + $0xd0] sm:$0xff]
    %v371 = vld [vmem:[#allocation2 + $0xd8] sm:$0xff]
    %v372 = vld [vmem:[#allocation2 + $0xe0] sm:$0xff]
    %v373 = vld [vmem:[#allocation2 + $0xe8] sm:$0xff]
    %v374 = vld [vmem:[#allocation2 + $0xf0] sm:$0xff]
    %v375 = vld [vmem:[#allocation2 + $0xf8] sm:$0xff]
    %v376 = vpack.c.bf16 %v316, %v314
    %v377 = vpack.c.bf16 %v317, %v315
    %s378 = scalar_lea.vmem [#allocation2], 256
    %v379 = vld [vmem:[%s378] sm:$0xff]
    %v380 = vld [vmem:[%s378 + $0x8] sm:$0xff]
    %v381 = vld [vmem:[%s378 + $0x10] sm:$0xff]
    %v382 = vld [vmem:[%s378 + $0x18] sm:$0xff]
    %v383 = vld [vmem:[%s378 + $0x20] sm:$0xff]
    %v384 = vld [vmem:[%s378 + $0x28] sm:$0xff]
    %v385 = vld [vmem:[%s378 + $0x30] sm:$0xff]
    %v386 = vld [vmem:[%s378 + $0x38] sm:$0xff]
    %v387 = vld [vmem:[%s378 + $0x40] sm:$0xff]
    %v388 = vld [vmem:[%s378 + $0x48] sm:$0xff]
    %v389 = vld [vmem:[%s378 + $0x50] sm:$0xff]
    %v390 = vld [vmem:[%s378 + $0x58] sm:$0xff]
    %v391 = vld [vmem:[%s378 + $0x60] sm:$0xff]
    %v392 = vld [vmem:[%s378 + $0x68] sm:$0xff]
    %v393 = vld [vmem:[%s378 + $0x70] sm:$0xff]
    %v394 = vld [vmem:[%s378 + $0x78] sm:$0xff]
    %v395 = vld [vmem:[%s378 + $0x80] sm:$0xff]
    %v396 = vld [vmem:[%s378 + $0x88] sm:$0xff]
    %v397 = vld [vmem:[%s378 + $0x90] sm:$0xff]
    %v398 = vld [vmem:[%s378 + $0x98] sm:$0xff]
    %v399 = vld [vmem:[%s378 + $0xa0] sm:$0xff]
    %v400 = vld [vmem:[%s378 + $0xa8] sm:$0xff]
    %v401 = vld [vmem:[%s378 + $0xb0] sm:$0xff]
    %v402 = vld [vmem:[%s378 + $0xb8] sm:$0xff]
    %v403 = vld [vmem:[%s378 + $0xc0] sm:$0xff]
    %v404 = vld [vmem:[%s378 + $0xc8] sm:$0xff]
    %v405 = vld [vmem:[%s378 + $0xd0] sm:$0xff]
    %v406 = vld [vmem:[%s378 + $0xd8] sm:$0xff]
    %v407 = vld [vmem:[%s378 + $0xe0] sm:$0xff]
    %v408 = vld [vmem:[%s378 + $0xe8] sm:$0xff]
    %v409 = vld [vmem:[%s378 + $0xf0] sm:$0xff]
    %v410 = vld [vmem:[%s378 + $0xf8] sm:$0xff]
    %v443 = vunpack.c.l.b16 %v379
    %v444 = vunpack.c.h.b16 %v379
    %v445 = vunpack.c.l.b16 %v380
    %v446 = vunpack.c.h.b16 %v380
    %v447 = vunpack.c.l.b16 %v381
    %v448 = vunpack.c.h.b16 %v381
    %v449 = vunpack.c.l.b16 %v382
    %v450 = vunpack.c.h.b16 %v382
    %v451 = vunpack.c.l.b16 %v383
    %v452 = vunpack.c.h.b16 %v383
    %v453 = vunpack.c.l.b16 %v384
    %v454 = vunpack.c.h.b16 %v384
    %v455 = vunpack.c.l.b16 %v385
    %v456 = vunpack.c.h.b16 %v385
    %v457 = vunpack.c.l.b16 %v386
    %v458 = vunpack.c.h.b16 %v386
    %v459 = vunpack.c.l.b16 %v387
    %v460 = vunpack.c.h.b16 %v387
    %v461 = vunpack.c.l.b16 %v388
    %v462 = vunpack.c.h.b16 %v388
    %v463 = vunpack.c.l.b16 %v389
    %v464 = vunpack.c.h.b16 %v389
    %v465 = vunpack.c.l.b16 %v390
    %v466 = vunpack.c.h.b16 %v390
    %v467 = vunpack.c.l.b16 %v391
    %v468 = vunpack.c.h.b16 %v391
    %v469 = vunpack.c.l.b16 %v392
    %v470 = vunpack.c.h.b16 %v392
    %v471 = vunpack.c.l.b16 %v393
    %v472 = vunpack.c.h.b16 %v393
    %v473 = vunpack.c.l.b16 %v394
    %v474 = vunpack.c.h.b16 %v394
    %v475 = vunpack.c.l.b16 %v395
    %v476 = vunpack.c.h.b16 %v395
    %v477 = vunpack.c.l.b16 %v396
    %v478 = vunpack.c.h.b16 %v396
    %v479 = vunpack.c.l.b16 %v397
    %v480 = vunpack.c.h.b16 %v397
    %v481 = vunpack.c.l.b16 %v398
    %v482 = vunpack.c.h.b16 %v398
    %v483 = vunpack.c.l.b16 %v399
    %v484 = vunpack.c.h.b16 %v399
    %v485 = vunpack.c.l.b16 %v400
    %v486 = vunpack.c.h.b16 %v400
    %v487 = vunpack.c.l.b16 %v401
    %v488 = vunpack.c.h.b16 %v401
    %v489 = vunpack.c.l.b16 %v402
    %v490 = vunpack.c.h.b16 %v402
    %v491 = vunpack.c.l.b16 %v403
    %v492 = vunpack.c.h.b16 %v403
    %v493 = vunpack.c.l.b16 %v404
    %v494 = vunpack.c.h.b16 %v404
    %v495 = vunpack.c.l.b16 %v405
    %v496 = vunpack.c.h.b16 %v405
    %v497 = vunpack.c.l.b16 %v406
    %v498 = vunpack.c.h.b16 %v406
    %v499 = vunpack.c.l.b16 %v407
    %v500 = vunpack.c.h.b16 %v407
    %v501 = vunpack.c.l.b16 %v408
    %v502 = vunpack.c.h.b16 %v408
    %v503 = vunpack.c.l.b16 %v409
    %v504 = vunpack.c.h.b16 %v409
    %v505 = vunpack.c.l.b16 %v410
    %v506 = vunpack.c.h.b16 %v410
    %v507 = vpack.c.b16 %v445, %v443
    %v508 = vpack.c.b16 %v446, %v444
    %v509 = vpack.c.b16 %v449, %v447
    %v510 = vpack.c.b16 %v450, %v448
    %v511 = vpack.c.b16 %v453, %v451
    %v512 = vpack.c.b16 %v454, %v452
    %v513 = vpack.c.b16 %v457, %v455
    %v514 = vpack.c.b16 %v458, %v456
    %v515 = vpack.c.b16 %v461, %v459
    %v516 = vpack.c.b16 %v462, %v460
    %v517 = vpack.c.b16 %v465, %v463
    %v518 = vpack.c.b16 %v466, %v464
    %v519 = vpack.c.b16 %v469, %v467
    %v520 = vpack.c.b16 %v470, %v468
    %v521 = vpack.c.b16 %v473, %v471
    %v522 = vpack.c.b16 %v474, %v472
    %v523 = vpack.c.b16 %v477, %v475
    %v524 = vpack.c.b16 %v478, %v476
    %v525 = vpack.c.b16 %v481, %v479
    %v526 = vpack.c.b16 %v482, %v480
    %v527 = vpack.c.b16 %v485, %v483
    %v528 = vpack.c.b16 %v486, %v484
    %v529 = vpack.c.b16 %v489, %v487
    %v530 = vpack.c.b16 %v490, %v488
    %v531 = vpack.c.b16 %v493, %v491
    %v532 = vpack.c.b16 %v494, %v492
    %v533 = vpack.c.b16 %v497, %v495
    %v534 = vpack.c.b16 %v498, %v496
    %v535 = vpack.c.b16 %v501, %v499
    %v536 = vpack.c.b16 %v502, %v500
    %v537 = vpack.c.b16 %v505, %v503
    %v538 = vpack.c.b16 %v506, %v504
    %571 = vmatprep.subr.bf16.mxu0 %v508
    %572 = vmatpush1.bf16.msra.mxu0 %v507
    %573 = vmatprep.subr.bf16.mxu0 %v510
    %574 = vmatpush1.bf16.msra.mxu0 %v509
    %575 = vmatprep.subr.bf16.mxu0 %v512
    %576 = vmatpush1.bf16.msra.mxu0 %v511
    %577 = vmatprep.subr.bf16.mxu0 %v514
    %578 = vmatpush1.bf16.msra.mxu0 %v513
    %579 = vmatprep.subr.bf16.mxu0 %v516
    %580 = vmatpush1.bf16.msra.mxu0 %v515
    %581 = vmatprep.subr.bf16.mxu0 %v518
    %582 = vmatpush1.bf16.msra.mxu0 %v517
    %583 = vmatprep.subr.bf16.mxu0 %v520
    %584 = vmatpush1.bf16.msra.mxu0 %v519
    %585 = vmatprep.subr.bf16.mxu0 %v522
    %586 = vmatpush1.bf16.msra.mxu0 %v521
    %587 = vmatprep.subr.bf16.mxu0 %v524
    %588 = vmatpush1.bf16.msra.mxu0 %v523
    %589 = vmatprep.subr.bf16.mxu0 %v526
    %590 = vmatpush1.bf16.msra.mxu0 %v525
    %591 = vmatprep.subr.bf16.mxu0 %v528
    %592 = vmatpush1.bf16.msra.mxu0 %v527
    %593 = vmatprep.subr.bf16.mxu0 %v530
    %594 = vmatpush1.bf16.msra.mxu0 %v529
    %595 = vmatprep.subr.bf16.mxu0 %v532
    %596 = vmatpush1.bf16.msra.mxu0 %v531
    %597 = vmatprep.subr.bf16.mxu0 %v534
    %598 = vmatpush1.bf16.msra.mxu0 %v533
    %599 = vmatprep.subr.bf16.mxu0 %v536
    %600 = vmatpush1.bf16.msra.mxu0 %v535
    %601 = vmatprep.subr.bf16.mxu0 %v538
    %602 = vmatpush1.bf16.msra.mxu0 %v537
    %603 = vmatprep.mubr.bf16.mxu0 %v377
    %604 = vmatmul.mubr.bf16.gmra.mrb[0].mxu0 %v376
    %v605 = vpop.f32.mrb[0].mxu0
    %v606 = vadd.f32 0.0, %v605
    %v607 = vpop.f32.mrb[0].mxu0
    %v608 = vadd.f32 0.0, %v607
    %v609 = vpop.f32.mrb[0].mxu0
    %v610 = vadd.f32 0.0, %v609
    %v611 = vpop.f32.mrb[0].mxu0
    %v612 = vadd.f32 0.0, %v611
    %613 = vdwg.mxu0
    %v646 = vunpack.c.l.b16 %v344
    %v647 = vunpack.c.h.b16 %v344
    %v648 = vunpack.c.l.b16 %v345
    %v649 = vunpack.c.h.b16 %v345
    %v650 = vunpack.c.l.b16 %v346
    %v651 = vunpack.c.h.b16 %v346
    %v652 = vunpack.c.l.b16 %v347
    %v653 = vunpack.c.h.b16 %v347
    %v654 = vunpack.c.l.b16 %v348
    %v655 = vunpack.c.h.b16 %v348
    %v656 = vunpack.c.l.b16 %v349
    %v657 = vunpack.c.h.b16 %v349
    %v658 = vunpack.c.l.b16 %v350
    %v659 = vunpack.c.h.b16 %v350
    %v660 = vunpack.c.l.b16 %v351
    %v661 = vunpack.c.h.b16 %v351
    %v662 = vunpack.c.l.b16 %v352
    %v663 = vunpack.c.h.b16 %v352
    %v664 = vunpack.c.l.b16 %v353
    %v665 = vunpack.c.h.b16 %v353
    %v666 = vunpack.c.l.b16 %v354
    %v667 = vunpack.c.h.b16 %v354
    %v668 = vunpack.c.l.b16 %v355
    %v669 = vunpack.c.h.b16 %v355
    %v670 = vunpack.c.l.b16 %v356
    %v671 = vunpack.c.h.b16 %v356
    %v672 = vunpack.c.l.b16 %v357
    %v673 = vunpack.c.h.b16 %v357
    %v674 = vunpack.c.l.b16 %v358
    %v675 = vunpack.c.h.b16 %v358
    %v676 = vunpack.c.l.b16 %v359
    %v677 = vunpack.c.h.b16 %v359
    %v678 = vunpack.c.l.b16 %v360
    %v679 = vunpack.c.h.b16 %v360
    %v680 = vunpack.c.l.b16 %v361
    %v681 = vunpack.c.h.b16 %v361
    %v682 = vunpack.c.l.b16 %v362
    %v683 = vunpack.c.h.b16 %v362
    %v684 = vunpack.c.l.b16 %v363
    %v685 = vunpack.c.h.b16 %v363
    %v686 = vunpack.c.l.b16 %v364
    %v687 = vunpack.c.h.b16 %v364
    %v688 = vunpack.c.l.b16 %v365
    %v689 = vunpack.c.h.b16 %v365
    %v690 = vunpack.c.l.b16 %v366
    %v691 = vunpack.c.h.b16 %v366
    %v692 = vunpack.c.l.b16 %v367
    %v693 = vunpack.c.h.b16 %v367
    %v694 = vunpack.c.l.b16 %v368
    %v695 = vunpack.c.h.b16 %v368
    %v696 = vunpack.c.l.b16 %v369
    %v697 = vunpack.c.h.b16 %v369
    %v698 = vunpack.c.l.b16 %v370
    %v699 = vunpack.c.h.b16 %v370
    %v700 = vunpack.c.l.b16 %v371
    %v701 = vunpack.c.h.b16 %v371
    %v702 = vunpack.c.l.b16 %v372
    %v703 = vunpack.c.h.b16 %v372
    %v704 = vunpack.c.l.b16 %v373
    %v705 = vunpack.c.h.b16 %v373
    %v706 = vunpack.c.l.b16 %v374
    %v707 = vunpack.c.h.b16 %v374
    %v708 = vunpack.c.l.b16 %v375
    %v709 = vunpack.c.h.b16 %v375
    %v710 = vpack.c.b16 %v648, %v646
    %v711 = vpack.c.b16 %v649, %v647
    %v712 = vpack.c.b16 %v652, %v650
    %v713 = vpack.c.b16 %v653, %v651
    %v714 = vpack.c.b16 %v656, %v654
    %v715 = vpack.c.b16 %v657, %v655
    %v716 = vpack.c.b16 %v660, %v658
    %v717 = vpack.c.b16 %v661, %v659
    %v718 = vpack.c.b16 %v664, %v662
    %v719 = vpack.c.b16 %v665, %v663
    %v720 = vpack.c.b16 %v668, %v666
    %v721 = vpack.c.b16 %v669, %v667
    %v722 = vpack.c.b16 %v672, %v670
    %v723 = vpack.c.b16 %v673, %v671
    %v724 = vpack.c.b16 %v676, %v674
    %v725 = vpack.c.b16 %v677, %v675
    %v726 = vpack.c.b16 %v680, %v678
    %v727 = vpack.c.b16 %v681, %v679
    %v728 = vpack.c.b16 %v684, %v682
    %v729 = vpack.c.b16 %v685, %v683
    %v730 = vpack.c.b16 %v688, %v686
    %v731 = vpack.c.b16 %v689, %v687
    %v732 = vpack.c.b16 %v692, %v690
    %v733 = vpack.c.b16 %v693, %v691
    %v734 = vpack.c.b16 %v696, %v694
    %v735 = vpack.c.b16 %v697, %v695
    %v736 = vpack.c.b16 %v700, %v698
    %v737 = vpack.c.b16 %v701, %v699
    %v738 = vpack.c.b16 %v704, %v702
    %v739 = vpack.c.b16 %v705, %v703
    %v740 = vpack.c.b16 %v708, %v706
    %v741 = vpack.c.b16 %v709, %v707
    %774 = vmatprep.subr.bf16.mxu0 %v711
    %775 = vmatpush1.bf16.msra.mxu0 %v710
    %776 = vmatprep.subr.bf16.mxu0 %v713
    %777 = vmatpush1.bf16.msra.mxu0 %v712
    %778 = vmatprep.subr.bf16.mxu0 %v715
    %779 = vmatpush1.bf16.msra.mxu0 %v714
    %780 = vmatprep.subr.bf16.mxu0 %v717
    %781 = vmatpush1.bf16.msra.mxu0 %v716
    %782 = vmatprep.subr.bf16.mxu0 %v719
    %783 = vmatpush1.bf16.msra.mxu0 %v718
    %784 = vmatprep.subr.bf16.mxu0 %v721
    %785 = vmatpush1.bf16.msra.mxu0 %v720
    %786 = vmatprep.subr.bf16.mxu0 %v723
    %787 = vmatpush1.bf16.msra.mxu0 %v722
    %788 = vmatprep.subr.bf16.mxu0 %v725
    %789 = vmatpush1.bf16.msra.mxu0 %v724
    %790 = vmatprep.subr.bf16.mxu0 %v727
    %791 = vmatpush1.bf16.msra.mxu0 %v726
    %792 = vmatprep.subr.bf16.mxu0 %v729
    %793 = vmatpush1.bf16.msra.mxu0 %v728
    %794 = vmatprep.subr.bf16.mxu0 %v731
    %795 = vmatpush1.bf16.msra.mxu0 %v730
    %796 = vmatprep.subr.bf16.mxu0 %v733
    %797 = vmatpush1.bf16.msra.mxu0 %v732
    %798 = vmatprep.subr.bf16.mxu0 %v735
    %799 = vmatpush1.bf16.msra.mxu0 %v734
    %800 = vmatprep.subr.bf16.mxu0 %v737
    %801 = vmatpush1.bf16.msra.mxu0 %v736
    %802 = vmatprep.subr.bf16.mxu0 %v739
    %803 = vmatpush1.bf16.msra.mxu0 %v738
    %804 = vmatprep.subr.bf16.mxu0 %v741
    %805 = vmatpush1.bf16.msra.mxu0 %v740
    %806 = vmatprep.mubr.bf16.mxu0 %v343
    %807 = vmatmul.mubr.bf16.gmra.mrb[0].mxu0 %v342
    %v808 = vpop.f32.mrb[0].mxu0
    %v809 = vadd.f32 %v606, %v808
    %v810 = vpop.f32.mrb[0].mxu0
    %v811 = vadd.f32 %v608, %v810
    %v812 = vpop.f32.mrb[0].mxu0
    %v813 = vadd.f32 %v610, %v812
    %v814 = vpop.f32.mrb[0].mxu0
    %v815 = vadd.f32 %v612, %v814
    %816 = vdwg.mxu0
    %v817 = vpack.c.bf16 %v340, %v338
    %v818 = vpack.c.bf16 %v341, %v339
    %s819 = scalar_lea.vmem [#allocation2], 512
    %v820 = vld [vmem:[%s819] sm:$0xff]
    %v821 = vld [vmem:[%s819 + $0x8] sm:$0xff]
    %v822 = vld [vmem:[%s819 + $0x10] sm:$0xff]
    %v823 = vld [vmem:[%s819 + $0x18] sm:$0xff]
    %v824 = vld [vmem:[%s819 + $0x20] sm:$0xff]
    %v825 = vld [vmem:[%s819 + $0x28] sm:$0xff]
    %v826 = vld [vmem:[%s819 + $0x30] sm:$0xff]
    %v827 = vld [vmem:[%s819 + $0x38] sm:$0xff]
    %v828 = vld [vmem:[%s819 + $0x40] sm:$0xff]
    %v829 = vld [vmem:[%s819 + $0x48] sm:$0xff]
    %v830 = vld [vmem:[%s819 + $0x50] sm:$0xff]
    %v831 = vld [vmem:[%s819 + $0x58] sm:$0xff]
    %v832 = vld [vmem:[%s819 + $0x60] sm:$0xff]
    %v833 = vld [vmem:[%s819 + $0x68] sm:$0xff]
    %v834 = vld [vmem:[%s819 + $0x70] sm:$0xff]
    %v835 = vld [vmem:[%s819 + $0x78] sm:$0xff]
    %v836 = vld [vmem:[%s819 + $0x80] sm:$0xff]
    %v837 = vld [vmem:[%s819 + $0x88] sm:$0xff]
    %v838 = vld [vmem:[%s819 + $0x90] sm:$0xff]
    %v839 = vld [vmem:[%s819 + $0x98] sm:$0xff]
    %v840 = vld [vmem:[%s819 + $0xa0] sm:$0xff]
    %v841 = vld [vmem:[%s819 + $0xa8] sm:$0xff]
    %v842 = vld [vmem:[%s819 + $0xb0] sm:$0xff]
    %v843 = vld [vmem:[%s819 + $0xb8] sm:$0xff]
    %v844 = vld [vmem:[%s819 + $0xc0] sm:$0xff]
    %v845 = vld [vmem:[%s819 + $0xc8] sm:$0xff]
    %v846 = vld [vmem:[%s819 + $0xd0] sm:$0xff]
    %v847 = vld [vmem:[%s819 + $0xd8] sm:$0xff]
    %v848 = vld [vmem:[%s819 + $0xe0] sm:$0xff]
    %v849 = vld [vmem:[%s819 + $0xe8] sm:$0xff]
    %v850 = vld [vmem:[%s819 + $0xf0] sm:$0xff]
    %v851 = vld [vmem:[%s819 + $0xf8] sm:$0xff]
    %v884 = vunpack.c.l.b16 %v820
    %v885 = vunpack.c.h.b16 %v820
    %v886 = vunpack.c.l.b16 %v821
    %v887 = vunpack.c.h.b16 %v821
    %v888 = vunpack.c.l.b16 %v822
    %v889 = vunpack.c.h.b16 %v822
    %v890 = vunpack.c.l.b16 %v823
    %v891 = vunpack.c.h.b16 %v823
    %v892 = vunpack.c.l.b16 %v824
    %v893 = vunpack.c.h.b16 %v824
    %v894 = vunpack.c.l.b16 %v825
    %v895 = vunpack.c.h.b16 %v825
    %v896 = vunpack.c.l.b16 %v826
    %v897 = vunpack.c.h.b16 %v826
    %v898 = vunpack.c.l.b16 %v827
    %v899 = vunpack.c.h.b16 %v827
    %v900 = vunpack.c.l.b16 %v828
    %v901 = vunpack.c.h.b16 %v828
    %v902 = vunpack.c.l.b16 %v829
    %v903 = vunpack.c.h.b16 %v829
    %v904 = vunpack.c.l.b16 %v830
    %v905 = vunpack.c.h.b16 %v830
    %v906 = vunpack.c.l.b16 %v831
    %v907 = vunpack.c.h.b16 %v831
    %v908 = vunpack.c.l.b16 %v832
    %v909 = vunpack.c.h.b16 %v832
    %v910 = vunpack.c.l.b16 %v833
    %v911 = vunpack.c.h.b16 %v833
    %v912 = vunpack.c.l.b16 %v834
    %v913 = vunpack.c.h.b16 %v834
    %v914 = vunpack.c.l.b16 %v835
    %v915 = vunpack.c.h.b16 %v835
    %v916 = vunpack.c.l.b16 %v836
    %v917 = vunpack.c.h.b16 %v836
    %v918 = vunpack.c.l.b16 %v837
    %v919 = vunpack.c.h.b16 %v837
    %v920 = vunpack.c.l.b16 %v838
    %v921 = vunpack.c.h.b16 %v838
    %v922 = vunpack.c.l.b16 %v839
    %v923 = vunpack.c.h.b16 %v839
    %v924 = vunpack.c.l.b16 %v840
    %v925 = vunpack.c.h.b16 %v840
    %v926 = vunpack.c.l.b16 %v841
    %v927 = vunpack.c.h.b16 %v841
    %v928 = vunpack.c.l.b16 %v842
    %v929 = vunpack.c.h.b16 %v842
    %v930 = vunpack.c.l.b16 %v843
    %v931 = vunpack.c.h.b16 %v843
    %v932 = vunpack.c.l.b16 %v844
    %v933 = vunpack.c.h.b16 %v844
    %v934 = vunpack.c.l.b16 %v845
    %v935 = vunpack.c.h.b16 %v845
    %v936 = vunpack.c.l.b16 %v846
    %v937 = vunpack.c.h.b16 %v846
    %v938 = vunpack.c.l.b16 %v847
    %v939 = vunpack.c.h.b16 %v847
    %v940 = vunpack.c.l.b16 %v848
    %v941 = vunpack.c.h.b16 %v848
    %v942 = vunpack.c.l.b16 %v849
    %v943 = vunpack.c.h.b16 %v849
    %v944 = vunpack.c.l.b16 %v850
    %v945 = vunpack.c.h.b16 %v850
    %v946 = vunpack.c.l.b16 %v851
    %v947 = vunpack.c.h.b16 %v851
    %v948 = vpack.c.b16 %v886, %v884
    %v949 = vpack.c.b16 %v887, %v885
    %v950 = vpack.c.b16 %v890, %v888
    %v951 = vpack.c.b16 %v891, %v889
    %v952 = vpack.c.b16 %v894, %v892
    %v953 = vpack.c.b16 %v895, %v893
    %v954 = vpack.c.b16 %v898, %v896
    %v955 = vpack.c.b16 %v899, %v897
    %v956 = vpack.c.b16 %v902, %v900
    %v957 = vpack.c.b16 %v903, %v901
    %v958 = vpack.c.b16 %v906, %v904
    %v959 = vpack.c.b16 %v907, %v905
    %v960 = vpack.c.b16 %v910, %v908
    %v961 = vpack.c.b16 %v911, %v909
    %v962 = vpack.c.b16 %v914, %v912
    %v963 = vpack.c.b16 %v915, %v913
    %v964 = vpack.c.b16 %v918, %v916
    %v965 = vpack.c.b16 %v919, %v917
    %v966 = vpack.c.b16 %v922, %v920
    %v967 = vpack.c.b16 %v923, %v921
    %v968 = vpack.c.b16 %v926, %v924
    %v969 = vpack.c.b16 %v927, %v925
    %v970 = vpack.c.b16 %v930, %v928
    %v971 = vpack.c.b16 %v931, %v929
    %v972 = vpack.c.b16 %v934, %v932
    %v973 = vpack.c.b16 %v935, %v933
    %v974 = vpack.c.b16 %v938, %v936
    %v975 = vpack.c.b16 %v939, %v937
    %v976 = vpack.c.b16 %v942, %v940
    %v977 = vpack.c.b16 %v943, %v941
    %v978 = vpack.c.b16 %v946, %v944
    %v979 = vpack.c.b16 %v947, %v945
    %1012 = vmatprep.subr.bf16.mxu0 %v949
    %1013 = vmatpush1.bf16.msra.mxu0 %v948
    %1014 = vmatprep.subr.bf16.mxu0 %v951
    %1015 = vmatpush1.bf16.msra.mxu0 %v950
    %1016 = vmatprep.subr.bf16.mxu0 %v953
    %1017 = vmatpush1.bf16.msra.mxu0 %v952
    %1018 = vmatprep.subr.bf16.mxu0 %v955
    %1019 = vmatpush1.bf16.msra.mxu0 %v954
    %1020 = vmatprep.subr.bf16.mxu0 %v957
    %1021 = vmatpush1.bf16.msra.mxu0 %v956
    %1022 = vmatprep.subr.bf16.mxu0 %v959
    %1023 = vmatpush1.bf16.msra.mxu0 %v958
    %1024 = vmatprep.subr.bf16.mxu0 %v961
    %1025 = vmatpush1.bf16.msra.mxu0 %v960
    %1026 = vmatprep.subr.bf16.mxu0 %v963
    %1027 = vmatpush1.bf16.msra.mxu0 %v962
    %1028 = vmatprep.subr.bf16.mxu0 %v965
    %1029 = vmatpush1.bf16.msra.mxu0 %v964
    %1030 = vmatprep.subr.bf16.mxu0 %v967
    %1031 = vmatpush1.bf16.msra.mxu0 %v966
    %1032 = vmatprep.subr.bf16.mxu0 %v969
    %1033 = vmatpush1.bf16.msra.mxu0 %v968
    %1034 = vmatprep.subr.bf16.mxu0 %v971
    %1035 = vmatpush1.bf16.msra.mxu0 %v970
    %1036 = vmatprep.subr.bf16.mxu0 %v973
    %1037 = vmatpush1.bf16.msra.mxu0 %v972
    %1038 = vmatprep.subr.bf16.mxu0 %v975
    %1039 = vmatpush1.bf16.msra.mxu0 %v974
    %1040 = vmatprep.subr.bf16.mxu0 %v977
    %1041 = vmatpush1.bf16.msra.mxu0 %v976
    %1042 = vmatprep.subr.bf16.mxu0 %v979
    %1043 = vmatpush1.bf16.msra.mxu0 %v978
    %1044 = vmatprep.mubr.bf16.mxu0 %v818
    %1045 = vmatmul.mubr.bf16.gmra.mrb[0].mxu0 %v817
    %v1046 = vpop.f32.mrb[0].mxu0
    %v1047 = vadd.f32 0.0, %v1046
    %v1048 = vpop.f32.mrb[0].mxu0
    %v1049 = vadd.f32 0.0, %v1048
    %v1050 = vpop.f32.mrb[0].mxu0
    %v1051 = vadd.f32 0.0, %v1050
    %v1052 = vpop.f32.mrb[0].mxu0
    %v1053 = vadd.f32 0.0, %v1052
    %1054 = vdwg.mxu0
    %v1055 = vadd.f32 %v809, %v1047
    %v1056 = vadd.f32 %v811, %v1049
    %v1057 = vadd.f32 %v813, %v1051
    %v1058 = vadd.f32 %v815, %v1053
    %v1059 = vld [vmem:[%s4] sm:$0x3]
    %v1061 = vlaneseq
    %v1062 = vshrl.u32 %v1061, 7
    %v1063 = vsub.s32 0, %v1062
    %v1064 = vrot.slane %v1059, %v1063
    %v1065 = vlaneseq
    %v1066 = vshrl.u32 %v1065, 7
    %v1067 = vsub.s32 1, %v1066
    %v1068 = vrot.slane %v1059, %v1067
    %v1071 = vadd.f32 %v1055, %v1064
    %v1072 = vadd.f32 %v1056, %v1068
    %v1073 = vadd.f32 %v1057, %v1064
    %v1074 = vadd.f32 %v1058, %v1068
    %v1075 = vmax.f32 %v1071, 0.0
    %v1076 = vmax.f32 %v1072, 0.0
    %v1077 = vmax.f32 %v1073, 0.0
    %v1078 = vmax.f32 %v1074, 0.0
    %v1079 = vpack.c.bf16 %v1075, %v1075
    %v1080 = vpack.c.bf16 %v1076, %v1076
    %v1081 = vld [vmem:[#allocation5] sm:$0xf]
    %v1082 = vld [vmem:[#allocation5 + $0x4] sm:$0xf]
    %v1083 = vld [vmem:[#allocation5 + $0x8] sm:$0xf]
    %v1084 = vld [vmem:[#allocation5 + $0xc] sm:$0xf]
    %v1085 = vld [vmem:[#allocation5 + $0x10] sm:$0xf]
    %v1086 = vld [vmem:[#allocation5 + $0x14] sm:$0xf]
    %v1087 = vld [vmem:[#allocation5 + $0x18] sm:$0xf]
    %v1088 = vld [vmem:[#allocation5 + $0x1c] sm:$0xf]
    %v1089 = vld [vmem:[#allocation5 + $0x20] sm:$0xf]
    %v1090 = vld [vmem:[#allocation5 + $0x24] sm:$0xf]
    %v1091 = vld [vmem:[#allocation5 + $0x28] sm:$0xf]
    %v1092 = vld [vmem:[#allocation5 + $0x2c] sm:$0xf]
    %v1093 = vld [vmem:[#allocation5 + $0x30] sm:$0xf]
    %v1094 = vld [vmem:[#allocation5 + $0x34] sm:$0xf]
    %v1095 = vld [vmem:[#allocation5 + $0x38] sm:$0xf]
    %v1096 = vld [vmem:[#allocation5 + $0x3c] sm:$0xf]
    %v1097 = vld [vmem:[#allocation5 + $0x40] sm:$0xf]
    %v1098 = vld [vmem:[#allocation5 + $0x44] sm:$0xf]
    %v1099 = vld [vmem:[#allocation5 + $0x48] sm:$0xf]
    %v1100 = vld [vmem:[#allocation5 + $0x4c] sm:$0xf]
    %v1101 = vld [vmem:[#allocation5 + $0x50] sm:$0xf]
    %v1102 = vld [vmem:[#allocation5 + $0x54] sm:$0xf]
    %v1103 = vld [vmem:[#allocation5 + $0x58] sm:$0xf]
    %v1104 = vld [vmem:[#allocation5 + $0x5c] sm:$0xf]
    %v1105 = vld [vmem:[#allocation5 + $0x60] sm:$0xf]
    %v1106 = vld [vmem:[#allocation5 + $0x64] sm:$0xf]
    %v1107 = vld [vmem:[#allocation5 + $0x68] sm:$0xf]
    %v1108 = vld [vmem:[#allocation5 + $0x6c] sm:$0xf]
    %v1109 = vld [vmem:[#allocation5 + $0x70] sm:$0xf]
    %v1110 = vld [vmem:[#allocation5 + $0x74] sm:$0xf]
    %v1111 = vld [vmem:[#allocation5 + $0x78] sm:$0xf]
    %v1112 = vld [vmem:[#allocation5 + $0x7c] sm:$0xf]
    %s1113 = scalar_lea.vmem [#allocation5], 128
    %v1114 = vld [vmem:[%s1113] sm:$0xf]
    %v1115 = vld [vmem:[%s1113 + $0x4] sm:$0xf]
    %v1116 = vld [vmem:[%s1113 + $0x8] sm:$0xf]
    %v1117 = vld [vmem:[%s1113 + $0xc] sm:$0xf]
    %v1118 = vld [vmem:[%s1113 + $0x10] sm:$0xf]
    %v1119 = vld [vmem:[%s1113 + $0x14] sm:$0xf]
    %v1120 = vld [vmem:[%s1113 + $0x18] sm:$0xf]
    %v1121 = vld [vmem:[%s1113 + $0x1c] sm:$0xf]
    %v1122 = vld [vmem:[%s1113 + $0x20] sm:$0xf]
    %v1123 = vld [vmem:[%s1113 + $0x24] sm:$0xf]
    %v1124 = vld [vmem:[%s1113 + $0x28] sm:$0xf]
    %v1125 = vld [vmem:[%s1113 + $0x2c] sm:$0xf]
    %v1126 = vld [vmem:[%s1113 + $0x30] sm:$0xf]
    %v1127 = vld [vmem:[%s1113 + $0x34] sm:$0xf]
    %v1128 = vld [vmem:[%s1113 + $0x38] sm:$0xf]
    %v1129 = vld [vmem:[%s1113 + $0x3c] sm:$0xf]
    %v1130 = vld [vmem:[%s1113 + $0x40] sm:$0xf]
    %v1131 = vld [vmem:[%s1113 + $0x44] sm:$0xf]
    %v1132 = vld [vmem:[%s1113 + $0x48] sm:$0xf]
    %v1133 = vld [vmem:[%s1113 + $0x4c] sm:$0xf]
    %v1134 = vld [vmem:[%s1113 + $0x50] sm:$0xf]
    %v1135 = vld [vmem:[%s1113 + $0x54] sm:$0xf]
    %v1136 = vld [vmem:[%s1113 + $0x58] sm:$0xf]
    %v1137 = vld [vmem:[%s1113 + $0x5c] sm:$0xf]
    %v1138 = vld [vmem:[%s1113 + $0x60] sm:$0xf]
    %v1139 = vld [vmem:[%s1113 + $0x64] sm:$0xf]
    %v1140 = vld [vmem:[%s1113 + $0x68] sm:$0xf]
    %v1141 = vld [vmem:[%s1113 + $0x6c] sm:$0xf]
    %v1142 = vld [vmem:[%s1113 + $0x70] sm:$0xf]
    %v1143 = vld [vmem:[%s1113 + $0x74] sm:$0xf]
    %v1144 = vld [vmem:[%s1113 + $0x78] sm:$0xf]
    %v1145 = vld [vmem:[%s1113 + $0x7c] sm:$0xf]
    %v1148 = vrot.slane %v1079, 1
    %v1149 = vrot.slane %v1080, 1
    %v1184 = vunpack.c.l.b16 %v1114
    %v1185 = vunpack.c.l.b16 %v1115
    %v1186 = vunpack.c.l.b16 %v1116
    %v1187 = vunpack.c.l.b16 %v1117
    %v1188 = vunpack.c.l.b16 %v1118
    %v1189 = vunpack.c.l.b16 %v1119
    %v1190 = vunpack.c.l.b16 %v1120
    %v1191 = vunpack.c.l.b16 %v1121
    %v1192 = vunpack.c.l.b16 %v1122
    %v1193 = vunpack.c.l.b16 %v1123
    %v1194 = vunpack.c.l.b16 %v1124
    %v1195 = vunpack.c.l.b16 %v1125
    %v1196 = vunpack.c.l.b16 %v1126
    %v1197 = vunpack.c.l.b16 %v1127
    %v1198 = vunpack.c.l.b16 %v1128
    %v1199 = vunpack.c.l.b16 %v1129
    %v1200 = vunpack.c.l.b16 %v1130
    %v1201 = vunpack.c.l.b16 %v1131
    %v1202 = vunpack.c.l.b16 %v1132
    %v1203 = vunpack.c.l.b16 %v1133
    %v1204 = vunpack.c.l.b16 %v1134
    %v1205 = vunpack.c.l.b16 %v1135
    %v1206 = vunpack.c.l.b16 %v1136
    %v1207 = vunpack.c.l.b16 %v1137
    %v1208 = vunpack.c.l.b16 %v1138
    %v1209 = vunpack.c.l.b16 %v1139
    %v1210 = vunpack.c.l.b16 %v1140
    %v1211 = vunpack.c.l.b16 %v1141
    %v1212 = vunpack.c.l.b16 %v1142
    %v1213 = vunpack.c.l.b16 %v1143
    %v1214 = vunpack.c.l.b16 %v1144
    %v1215 = vunpack.c.l.b16 %v1145
    %v1216 = vpack.c.b16 %v1185, %v1184
    %v1217 = vpack.c.b16 %v1187, %v1186
    %v1218 = vpack.c.b16 %v1189, %v1188
    %v1219 = vpack.c.b16 %v1191, %v1190
    %v1220 = vpack.c.b16 %v1193, %v1192
    %v1221 = vpack.c.b16 %v1195, %v1194
    %v1222 = vpack.c.b16 %v1197, %v1196
    %v1223 = vpack.c.b16 %v1199, %v1198
    %v1224 = vpack.c.b16 %v1201, %v1200
    %v1225 = vpack.c.b16 %v1203, %v1202
    %v1226 = vpack.c.b16 %v1205, %v1204
    %v1227 = vpack.c.b16 %v1207, %v1206
    %v1228 = vpack.c.b16 %v1209, %v1208
    %v1229 = vpack.c.b16 %v1211, %v1210
    %v1230 = vpack.c.b16 %v1213, %v1212
    %v1231 = vpack.c.b16 %v1215, %v1214
    %1248 = vmatprep.subr.bf16.mxu0 0
    %1249 = vmatpush1.bf16.msra.mxu0 %v1216
    %1250 = vmatprep.subr.bf16.mxu0 0
    %1251 = vmatpush1.bf16.msra.mxu0 %v1217
    %1252 = vmatprep.subr.bf16.mxu0 0
    %1253 = vmatpush1.bf16.msra.mxu0 %v1218
    %1254 = vmatprep.subr.bf16.mxu0 0
    %1255 = vmatpush1.bf16.msra.mxu0 %v1219
    %1256 = vmatprep.subr.bf16.mxu0 0
    %1257 = vmatpush1.bf16.msra.mxu0 %v1220
    %1258 = vmatprep.subr.bf16.mxu0 0
    %1259 = vmatpush1.bf16.msra.mxu0 %v1221
    %1260 = vmatprep.subr.bf16.mxu0 0
    %1261 = vmatpush1.bf16.msra.mxu0 %v1222
    %1262 = vmatprep.subr.bf16.mxu0 0
    %1263 = vmatpush1.bf16.msra.mxu0 %v1223
    %1264 = vmatprep.subr.bf16.mxu0 0
    %1265 = vmatpush1.bf16.msra.mxu0 %v1224
    %1266 = vmatprep.subr.bf16.mxu0 0
    %1267 = vmatpush1.bf16.msra.mxu0 %v1225
    %1268 = vmatprep.subr.bf16.mxu0 0
    %1269 = vmatpush1.bf16.msra.mxu0 %v1226
    %1270 = vmatprep.subr.bf16.mxu0 0
    %1271 = vmatpush1.bf16.msra.mxu0 %v1227
    %1272 = vmatprep.subr.bf16.mxu0 0
    %1273 = vmatpush1.bf16.msra.mxu0 %v1228
    %1274 = vmatprep.subr.bf16.mxu0 0
    %1275 = vmatpush1.bf16.msra.mxu0 %v1229
    %1276 = vmatprep.subr.bf16.mxu0 0
    %1277 = vmatpush1.bf16.msra.mxu0 %v1230
    %1278 = vmatprep.subr.bf16.mxu0 0
    %1279 = vmatpush1.bf16.msra.mxu0 %v1231
    %1280 = vmatprep.mubr.bf16.mxu0 %v1149
    %1281 = vmatmul.mubr.bf16.gmra.mrb[0].mxu0 %v1148
    %v1282 = vpop.f32.mrb[0].mxu0
    %v1283 = vadd.f32 0.0, %v1282
    %v1284 = vpop.f32.mrb[0].mxu0
    %v1285 = vpop.f32.mrb[0].mxu0
    %v1286 = vpop.f32.mrb[0].mxu0
    %1287 = vdwg.mxu0
    %v1320 = vunpack.c.l.b16 %v1081
    %v1321 = vunpack.c.l.b16 %v1082
    %v1322 = vunpack.c.l.b16 %v1083
    %v1323 = vunpack.c.l.b16 %v1084
    %v1324 = vunpack.c.l.b16 %v1085
    %v1325 = vunpack.c.l.b16 %v1086
    %v1326 = vunpack.c.l.b16 %v1087
    %v1327 = vunpack.c.l.b16 %v1088
    %v1328 = vunpack.c.l.b16 %v1089
    %v1329 = vunpack.c.l.b16 %v1090
    %v1330 = vunpack.c.l.b16 %v1091
    %v1331 = vunpack.c.l.b16 %v1092
    %v1332 = vunpack.c.l.b16 %v1093
    %v1333 = vunpack.c.l.b16 %v1094
    %v1334 = vunpack.c.l.b16 %v1095
    %v1335 = vunpack.c.l.b16 %v1096
    %v1336 = vunpack.c.l.b16 %v1097
    %v1337 = vunpack.c.l.b16 %v1098
    %v1338 = vunpack.c.l.b16 %v1099
    %v1339 = vunpack.c.l.b16 %v1100
    %v1340 = vunpack.c.l.b16 %v1101
    %v1341 = vunpack.c.l.b16 %v1102
    %v1342 = vunpack.c.l.b16 %v1103
    %v1343 = vunpack.c.l.b16 %v1104
    %v1344 = vunpack.c.l.b16 %v1105
    %v1345 = vunpack.c.l.b16 %v1106
    %v1346 = vunpack.c.l.b16 %v1107
    %v1347 = vunpack.c.l.b16 %v1108
    %v1348 = vunpack.c.l.b16 %v1109
    %v1349 = vunpack.c.l.b16 %v1110
    %v1350 = vunpack.c.l.b16 %v1111
    %v1351 = vunpack.c.l.b16 %v1112
    %v1352 = vpack.c.b16 %v1321, %v1320
    %v1353 = vpack.c.b16 %v1323, %v1322
    %v1354 = vpack.c.b16 %v1325, %v1324
    %v1355 = vpack.c.b16 %v1327, %v1326
    %v1356 = vpack.c.b16 %v1329, %v1328
    %v1357 = vpack.c.b16 %v1331, %v1330
    %v1358 = vpack.c.b16 %v1333, %v1332
    %v1359 = vpack.c.b16 %v1335, %v1334
    %v1360 = vpack.c.b16 %v1337, %v1336
    %v1361 = vpack.c.b16 %v1339, %v1338
    %v1362 = vpack.c.b16 %v1341, %v1340
    %v1363 = vpack.c.b16 %v1343, %v1342
    %v1364 = vpack.c.b16 %v1345, %v1344
    %v1365 = vpack.c.b16 %v1347, %v1346
    %v1366 = vpack.c.b16 %v1349, %v1348
    %v1367 = vpack.c.b16 %v1351, %v1350
    %1384 = vmatprep.subr.bf16.mxu0 0
    %1385 = vmatpush1.bf16.msra.mxu0 %v1352
    %1386 = vmatprep.subr.bf16.mxu0 0
    %1387 = vmatpush1.bf16.msra.mxu0 %v1353
    %1388 = vmatprep.subr.bf16.mxu0 0
    %1389 = vmatpush1.bf16.msra.mxu0 %v1354
    %1390 = vmatprep.subr.bf16.mxu0 0
    %1391 = vmatpush1.bf16.msra.mxu0 %v1355
    %1392 = vmatprep.subr.bf16.mxu0 0
    %1393 = vmatpush1.bf16.msra.mxu0 %v1356
    %1394 = vmatprep.subr.bf16.mxu0 0
    %1395 = vmatpush1.bf16.msra.mxu0 %v1357
    %1396 = vmatprep.subr.bf16.mxu0 0
    %1397 = vmatpush1.bf16.msra.mxu0 %v1358
    %1398 = vmatprep.subr.bf16.mxu0 0
    %1399 = vmatpush1.bf16.msra.mxu0 %v1359
    %1400 = vmatprep.subr.bf16.mxu0 0
    %1401 = vmatpush1.bf16.msra.mxu0 %v1360
    %1402 = vmatprep.subr.bf16.mxu0 0
    %1403 = vmatpush1.bf16.msra.mxu0 %v1361
    %1404 = vmatprep.subr.bf16.mxu0 0
    %1405 = vmatpush1.bf16.msra.mxu0 %v1362
    %1406 = vmatprep.subr.bf16.mxu0 0
    %1407 = vmatpush1.bf16.msra.mxu0 %v1363
    %1408 = vmatprep.subr.bf16.mxu0 0
    %1409 = vmatpush1.bf16.msra.mxu0 %v1364
    %1410 = vmatprep.subr.bf16.mxu0 0
    %1411 = vmatpush1.bf16.msra.mxu0 %v1365
    %1412 = vmatprep.subr.bf16.mxu0 0
    %1413 = vmatpush1.bf16.msra.mxu0 %v1366
    %1414 = vmatprep.subr.bf16.mxu0 0
    %1415 = vmatpush1.bf16.msra.mxu0 %v1367
    %1416 = vmatprep.mubr.bf16.mxu0 %v1080
    %1417 = vmatmul.mubr.bf16.gmra.mrb[0].mxu0 %v1079
    %v1418 = vpop.f32.mrb[0].mxu0
    %v1419 = vadd.f32 %v1283, %v1418
    %v1420 = vpop.f32.mrb[0].mxu0
    %v1421 = vpop.f32.mrb[0].mxu0
    %v1422 = vpop.f32.mrb[0].mxu0
    %1423 = vdwg.mxu0
    %s1424 = scalar_lea.vmem [#allocation5], 256
    %v1425 = vld [vmem:[%s1424] sm:$0xf]
    %v1426 = vld [vmem:[%s1424 + $0x4] sm:$0xf]
    %v1427 = vld [vmem:[%s1424 + $0x8] sm:$0xf]
    %v1428 = vld [vmem:[%s1424 + $0xc] sm:$0xf]
    %v1429 = vld [vmem:[%s1424 + $0x10] sm:$0xf]
    %v1430 = vld [vmem:[%s1424 + $0x14] sm:$0xf]
    %v1431 = vld [vmem:[%s1424 + $0x18] sm:$0xf]
    %v1432 = vld [vmem:[%s1424 + $0x1c] sm:$0xf]
    %v1433 = vld [vmem:[%s1424 + $0x20] sm:$0xf]
    %v1434 = vld [vmem:[%s1424 + $0x24] sm:$0xf]
    %v1435 = vld [vmem:[%s1424 + $0x28] sm:$0xf]
    %v1436 = vld [vmem:[%s1424 + $0x2c] sm:$0xf]
    %v1437 = vld [vmem:[%s1424 + $0x30] sm:$0xf]
    %v1438 = vld [vmem:[%s1424 + $0x34] sm:$0xf]
    %v1439 = vld [vmem:[%s1424 + $0x38] sm:$0xf]
    %v1440 = vld [vmem:[%s1424 + $0x3c] sm:$0xf]
    %v1441 = vld [vmem:[%s1424 + $0x40] sm:$0xf]
    %v1442 = vld [vmem:[%s1424 + $0x44] sm:$0xf]
    %v1443 = vld [vmem:[%s1424 + $0x48] sm:$0xf]
    %v1444 = vld [vmem:[%s1424 + $0x4c] sm:$0xf]
    %v1445 = vld [vmem:[%s1424 + $0x50] sm:$0xf]
    %v1446 = vld [vmem:[%s1424 + $0x54] sm:$0xf]
    %v1447 = vld [vmem:[%s1424 + $0x58] sm:$0xf]
    %v1448 = vld [vmem:[%s1424 + $0x5c] sm:$0xf]
    %v1449 = vld [vmem:[%s1424 + $0x60] sm:$0xf]
    %v1450 = vld [vmem:[%s1424 + $0x64] sm:$0xf]
    %v1451 = vld [vmem:[%s1424 + $0x68] sm:$0xf]
    %v1452 = vld [vmem:[%s1424 + $0x6c] sm:$0xf]
    %v1453 = vld [vmem:[%s1424 + $0x70] sm:$0xf]
    %v1454 = vld [vmem:[%s1424 + $0x74] sm:$0xf]
    %v1455 = vld [vmem:[%s1424 + $0x78] sm:$0xf]
    %v1456 = vld [vmem:[%s1424 + $0x7c] sm:$0xf]
    %v1457 = vrot.slane %v1079, 2
    %v1458 = vrot.slane %v1080, 2
    %v1493 = vunpack.c.l.b16 %v1425
    %v1494 = vunpack.c.l.b16 %v1426
    %v1495 = vunpack.c.l.b16 %v1427
    %v1496 = vunpack.c.l.b16 %v1428
    %v1497 = vunpack.c.l.b16 %v1429
    %v1498 = vunpack.c.l.b16 %v1430
    %v1499 = vunpack.c.l.b16 %v1431
    %v1500 = vunpack.c.l.b16 %v1432
    %v1501 = vunpack.c.l.b16 %v1433
    %v1502 = vunpack.c.l.b16 %v1434
    %v1503 = vunpack.c.l.b16 %v1435
    %v1504 = vunpack.c.l.b16 %v1436
    %v1505 = vunpack.c.l.b16 %v1437
    %v1506 = vunpack.c.l.b16 %v1438
    %v1507 = vunpack.c.l.b16 %v1439
    %v1508 = vunpack.c.l.b16 %v1440
    %v1509 = vunpack.c.l.b16 %v1441
    %v1510 = vunpack.c.l.b16 %v1442
    %v1511 = vunpack.c.l.b16 %v1443
    %v1512 = vunpack.c.l.b16 %v1444
    %v1513 = vunpack.c.l.b16 %v1445
    %v1514 = vunpack.c.l.b16 %v1446
    %v1515 = vunpack.c.l.b16 %v1447
    %v1516 = vunpack.c.l.b16 %v1448
    %v1517 = vunpack.c.l.b16 %v1449
    %v1518 = vunpack.c.l.b16 %v1450
    %v1519 = vunpack.c.l.b16 %v1451
    %v1520 = vunpack.c.l.b16 %v1452
    %v1521 = vunpack.c.l.b16 %v1453
    %v1522 = vunpack.c.l.b16 %v1454
    %v1523 = vunpack.c.l.b16 %v1455
    %v1524 = vunpack.c.l.b16 %v1456
    %v1525 = vpack.c.b16 %v1494, %v1493
    %v1526 = vpack.c.b16 %v1496, %v1495
    %v1527 = vpack.c.b16 %v1498, %v1497
    %v1528 = vpack.c.b16 %v1500, %v1499
    %v1529 = vpack.c.b16 %v1502, %v1501
    %v1530 = vpack.c.b16 %v1504, %v1503
    %v1531 = vpack.c.b16 %v1506, %v1505
    %v1532 = vpack.c.b16 %v1508, %v1507
    %v1533 = vpack.c.b16 %v1510, %v1509
    %v1534 = vpack.c.b16 %v1512, %v1511
    %v1535 = vpack.c.b16 %v1514, %v1513
    %v1536 = vpack.c.b16 %v1516, %v1515
    %v1537 = vpack.c.b16 %v1518, %v1517
    %v1538 = vpack.c.b16 %v1520, %v1519
    %v1539 = vpack.c.b16 %v1522, %v1521
    %v1540 = vpack.c.b16 %v1524, %v1523
    %1557 = vmatprep.subr.bf16.mxu0 0
    %1558 = vmatpush1.bf16.msra.mxu0 %v1525
    %1559 = vmatprep.subr.bf16.mxu0 0
    %1560 = vmatpush1.bf16.msra.mxu0 %v1526
    %1561 = vmatprep.subr.bf16.mxu0 0
    %1562 = vmatpush1.bf16.msra.mxu0 %v1527
    %1563 = vmatprep.subr.bf16.mxu0 0
    %1564 = vmatpush1.bf16.msra.mxu0 %v1528
    %1565 = vmatprep.subr.bf16.mxu0 0
    %1566 = vmatpush1.bf16.msra.mxu0 %v1529
    %1567 = vmatprep.subr.bf16.mxu0 0
    %1568 = vmatpush1.bf16.msra.mxu0 %v1530
    %1569 = vmatprep.subr.bf16.mxu0 0
    %1570 = vmatpush1.bf16.msra.mxu0 %v1531
    %1571 = vmatprep.subr.bf16.mxu0 0
    %1572 = vmatpush1.bf16.msra.mxu0 %v1532
    %1573 = vmatprep.subr.bf16.mxu0 0
    %1574 = vmatpush1.bf16.msra.mxu0 %v1533
    %1575 = vmatprep.subr.bf16.mxu0 0
    %1576 = vmatpush1.bf16.msra.mxu0 %v1534
    %1577 = vmatprep.subr.bf16.mxu0 0
    %1578 = vmatpush1.bf16.msra.mxu0 %v1535
    %1579 = vmatprep.subr.bf16.mxu0 0
    %1580 = vmatpush1.bf16.msra.mxu0 %v1536
    %1581 = vmatprep.subr.bf16.mxu0 0
    %1582 = vmatpush1.bf16.msra.mxu0 %v1537
    %1583 = vmatprep.subr.bf16.mxu0 0
    %1584 = vmatpush1.bf16.msra.mxu0 %v1538
    %1585 = vmatprep.subr.bf16.mxu0 0
    %1586 = vmatpush1.bf16.msra.mxu0 %v1539
    %1587 = vmatprep.subr.bf16.mxu0 0
    %1588 = vmatpush1.bf16.msra.mxu0 %v1540
    %1589 = vmatprep.mubr.bf16.mxu0 %v1458
    %1590 = vmatmul.mubr.bf16.gmra.mrb[0].mxu0 %v1457
    %v1591 = vpop.f32.mrb[0].mxu0
    %v1592 = vadd.f32 0.0, %v1591
    %v1593 = vpop.f32.mrb[0].mxu0
    %v1594 = vpop.f32.mrb[0].mxu0
    %v1595 = vpop.f32.mrb[0].mxu0
    %1596 = vdwg.mxu0
    %v1597 = vadd.f32 %v1419, %v1592
    %s1598 = scalar_lea.vmem [#allocation5], 384
    %v1599 = vld [vmem:[%s1598] sm:$0xf]
    %v1600 = vld [vmem:[%s1598 + $0x4] sm:$0xf]
    %v1601 = vld [vmem:[%s1598 + $0x8] sm:$0xf]
    %v1602 = vld [vmem:[%s1598 + $0xc] sm:$0xf]
    %v1603 = vld [vmem:[%s1598 + $0x10] sm:$0xf]
    %v1604 = vld [vmem:[%s1598 + $0x14] sm:$0xf]
    %v1605 = vld [vmem:[%s1598 + $0x18] sm:$0xf]
    %v1606 = vld [vmem:[%s1598 + $0x1c] sm:$0xf]
    %v1607 = vld [vmem:[%s1598 + $0x20] sm:$0xf]
    %v1608 = vld [vmem:[%s1598 + $0x24] sm:$0xf]
    %v1609 = vld [vmem:[%s1598 + $0x28] sm:$0xf]
    %v1610 = vld [vmem:[%s1598 + $0x2c] sm:$0xf]
    %v1611 = vld [vmem:[%s1598 + $0x30] sm:$0xf]
    %v1612 = vld [vmem:[%s1598 + $0x34] sm:$0xf]
    %v1613 = vld [vmem:[%s1598 + $0x38] sm:$0xf]
    %v1614 = vld [vmem:[%s1598 + $0x3c] sm:$0xf]
    %v1615 = vld [vmem:[%s1598 + $0x40] sm:$0xf]
    %v1616 = vld [vmem:[%s1598 + $0x44] sm:$0xf]
    %v1617 = vld [vmem:[%s1598 + $0x48] sm:$0xf]
    %v1618 = vld [vmem:[%s1598 + $0x4c] sm:$0xf]
    %v1619 = vld [vmem:[%s1598 + $0x50] sm:$0xf]
    %v1620 = vld [vmem:[%s1598 + $0x54] sm:$0xf]
    %v1621 = vld [vmem:[%s1598 + $0x58] sm:$0xf]
    %v1622 = vld [vmem:[%s1598 + $0x5c] sm:$0xf]
    %v1623 = vld [vmem:[%s1598 + $0x60] sm:$0xf]
    %v1624 = vld [vmem:[%s1598 + $0x64] sm:$0xf]
    %v1625 = vld [vmem:[%s1598 + $0x68] sm:$0xf]
    %v1626 = vld [vmem:[%s1598 + $0x6c] sm:$0xf]
    %v1627 = vld [vmem:[%s1598 + $0x70] sm:$0xf]
    %v1628 = vld [vmem:[%s1598 + $0x74] sm:$0xf]
    %v1629 = vld [vmem:[%s1598 + $0x78] sm:$0xf]
    %v1630 = vld [vmem:[%s1598 + $0x7c] sm:$0xf]
    %v1631 = vrot.slane %v1079, 3
    %v1632 = vrot.slane %v1080, 3
    %v1667 = vunpack.c.l.b16 %v1599
    %v1668 = vunpack.c.l.b16 %v1600
    %v1669 = vunpack.c.l.b16 %v1601
    %v1670 = vunpack.c.l.b16 %v1602
    %v1671 = vunpack.c.l.b16 %v1603
    %v1672 = vunpack.c.l.b16 %v1604
    %v1673 = vunpack.c.l.b16 %v1605
    %v1674 = vunpack.c.l.b16 %v1606
    %v1675 = vunpack.c.l.b16 %v1607
    %v1676 = vunpack.c.l.b16 %v1608
    %v1677 = vunpack.c.l.b16 %v1609
    %v1678 = vunpack.c.l.b16 %v1610
    %v1679 = vunpack.c.l.b16 %v1611
    %v1680 = vunpack.c.l.b16 %v1612
    %v1681 = vunpack.c.l.b16 %v1613
    %v1682 = vunpack.c.l.b16 %v1614
    %v1683 = vunpack.c.l.b16 %v1615
    %v1684 = vunpack.c.l.b16 %v1616
    %v1685 = vunpack.c.l.b16 %v1617
    %v1686 = vunpack.c.l.b16 %v1618
    %v1687 = vunpack.c.l.b16 %v1619
    %v1688 = vunpack.c.l.b16 %v1620
    %v1689 = vunpack.c.l.b16 %v1621
    %v1690 = vunpack.c.l.b16 %v1622
    %v1691 = vunpack.c.l.b16 %v1623
    %v1692 = vunpack.c.l.b16 %v1624
    %v1693 = vunpack.c.l.b16 %v1625
    %v1694 = vunpack.c.l.b16 %v1626
    %v1695 = vunpack.c.l.b16 %v1627
    %v1696 = vunpack.c.l.b16 %v1628
    %v1697 = vunpack.c.l.b16 %v1629
    %v1698 = vunpack.c.l.b16 %v1630
    %v1699 = vpack.c.b16 %v1668, %v1667
    %v1700 = vpack.c.b16 %v1670, %v1669
    %v1701 = vpack.c.b16 %v1672, %v1671
    %v1702 = vpack.c.b16 %v1674, %v1673
    %v1703 = vpack.c.b16 %v1676, %v1675
    %v1704 = vpack.c.b16 %v1678, %v1677
    %v1705 = vpack.c.b16 %v1680, %v1679
    %v1706 = vpack.c.b16 %v1682, %v1681
    %v1707 = vpack.c.b16 %v1684, %v1683
    %v1708 = vpack.c.b16 %v1686, %v1685
    %v1709 = vpack.c.b16 %v1688, %v1687
    %v1710 = vpack.c.b16 %v1690, %v1689
    %v1711 = vpack.c.b16 %v1692, %v1691
    %v1712 = vpack.c.b16 %v1694, %v1693
    %v1713 = vpack.c.b16 %v1696, %v1695
    %v1714 = vpack.c.b16 %v1698, %v1697
    %1731 = vmatprep.subr.bf16.mxu0 0
    %1732 = vmatpush1.bf16.msra.mxu0 %v1699
    %1733 = vmatprep.subr.bf16.mxu0 0
    %1734 = vmatpush1.bf16.msra.mxu0 %v1700
    %1735 = vmatprep.subr.bf16.mxu0 0
    %1736 = vmatpush1.bf16.msra.mxu0 %v1701
    %1737 = vmatprep.subr.bf16.mxu0 0
    %1738 = vmatpush1.bf16.msra.mxu0 %v1702
    %1739 = vmatprep.subr.bf16.mxu0 0
    %1740 = vmatpush1.bf16.msra.mxu0 %v1703
    %1741 = vmatprep.subr.bf16.mxu0 0
    %1742 = vmatpush1.bf16.msra.mxu0 %v1704
    %1743 = vmatprep.subr.bf16.mxu0 0
    %1744 = vmatpush1.bf16.msra.mxu0 %v1705
    %1745 = vmatprep.subr.bf16.mxu0 0
    %1746 = vmatpush1.bf16.msra.mxu0 %v1706
    %1747 = vmatprep.subr.bf16.mxu0 0
    %1748 = vmatpush1.bf16.msra.mxu0 %v1707
    %1749 = vmatprep.subr.bf16.mxu0 0
    %1750 = vmatpush1.bf16.msra.mxu0 %v1708
    %1751 = vmatprep.subr.bf16.mxu0 0
    %1752 = vmatpush1.bf16.msra.mxu0 %v1709
    %1753 = vmatprep.subr.bf16.mxu0 0
    %1754 = vmatpush1.bf16.msra.mxu0 %v1710
    %1755 = vmatprep.subr.bf16.mxu0 0
    %1756 = vmatpush1.bf16.msra.mxu0 %v1711
    %1757 = vmatprep.subr.bf16.mxu0 0
    %1758 = vmatpush1.bf16.msra.mxu0 %v1712
    %1759 = vmatprep.subr.bf16.mxu0 0
    %1760 = vmatpush1.bf16.msra.mxu0 %v1713
    %1761 = vmatprep.subr.bf16.mxu0 0
    %1762 = vmatpush1.bf16.msra.mxu0 %v1714
    %1763 = vmatprep.mubr.bf16.mxu0 %v1632
    %1764 = vmatmul.mubr.bf16.gmra.mrb[0].mxu0 %v1631
    %v1765 = vpop.f32.mrb[0].mxu0
    %v1766 = vadd.f32 0.0, %v1765
    %v1767 = vpop.f32.mrb[0].mxu0
    %v1768 = vpop.f32.mrb[0].mxu0
    %v1769 = vpop.f32.mrb[0].mxu0
    %1770 = vdwg.mxu0
    %v1771 = vadd.f32 %v1597, %v1766
    %v1772 = vpack.c.bf16 %v1077, %v1077
    %v1773 = vpack.c.bf16 %v1078, %v1078
    %s1774 = scalar_lea.vmem [#allocation5], 512
    %v1775 = vld [vmem:[%s1774] sm:$0xf]
    %v1776 = vld [vmem:[%s1774 + $0x4] sm:$0xf]
    %v1777 = vld [vmem:[%s1774 + $0x8] sm:$0xf]
    %v1778 = vld [vmem:[%s1774 + $0xc] sm:$0xf]
    %v1779 = vld [vmem:[%s1774 + $0x10] sm:$0xf]
    %v1780 = vld [vmem:[%s1774 + $0x14] sm:$0xf]
    %v1781 = vld [vmem:[%s1774 + $0x18] sm:$0xf]
    %v1782 = vld [vmem:[%s1774 + $0x1c] sm:$0xf]
    %v1783 = vld [vmem:[%s1774 + $0x20] sm:$0xf]
    %v1784 = vld [vmem:[%s1774 + $0x24] sm:$0xf]
    %v1785 = vld [vmem:[%s1774 + $0x28] sm:$0xf]
    %v1786 = vld [vmem:[%s1774 + $0x2c] sm:$0xf]
    %v1787 = vld [vmem:[%s1774 + $0x30] sm:$0xf]
    %v1788 = vld [vmem:[%s1774 + $0x34] sm:$0xf]
    %v1789 = vld [vmem:[%s1774 + $0x38] sm:$0xf]
    %v1790 = vld [vmem:[%s1774 + $0x3c] sm:$0xf]
    %v1791 = vld [vmem:[%s1774 + $0x40] sm:$0xf]
    %v1792 = vld [vmem:[%s1774 + $0x44] sm:$0xf]
    %v1793 = vld [vmem:[%s1774 + $0x48] sm:$0xf]
    %v1794 = vld [vmem:[%s1774 + $0x4c] sm:$0xf]
    %v1795 = vld [vmem:[%s1774 + $0x50] sm:$0xf]
    %v1796 = vld [vmem:[%s1774 + $0x54] sm:$0xf]
    %v1797 = vld [vmem:[%s1774 + $0x58] sm:$0xf]
    %v1798 = vld [vmem:[%s1774 + $0x5c] sm:$0xf]
    %v1799 = vld [vmem:[%s1774 + $0x60] sm:$0xf]
    %v1800 = vld [vmem:[%s1774 + $0x64] sm:$0xf]
    %v1801 = vld [vmem:[%s1774 + $0x68] sm:$0xf]
    %v1802 = vld [vmem:[%s1774 + $0x6c] sm:$0xf]
    %v1803 = vld [vmem:[%s1774 + $0x70] sm:$0xf]
    %v1804 = vld [vmem:[%s1774 + $0x74] sm:$0xf]
    %v1805 = vld [vmem:[%s1774 + $0x78] sm:$0xf]
    %v1806 = vld [vmem:[%s1774 + $0x7c] sm:$0xf]
    %v1839 = vunpack.c.l.b16 %v1775
    %v1840 = vunpack.c.l.b16 %v1776
    %v1841 = vunpack.c.l.b16 %v1777
    %v1842 = vunpack.c.l.b16 %v1778
    %v1843 = vunpack.c.l.b16 %v1779
    %v1844 = vunpack.c.l.b16 %v1780
    %v1845 = vunpack.c.l.b16 %v1781
    %v1846 = vunpack.c.l.b16 %v1782
    %v1847 = vunpack.c.l.b16 %v1783
    %v1848 = vunpack.c.l.b16 %v1784
    %v1849 = vunpack.c.l.b16 %v1785
    %v1850 = vunpack.c.l.b16 %v1786
    %v1851 = vunpack.c.l.b16 %v1787
    %v1852 = vunpack.c.l.b16 %v1788
    %v1853 = vunpack.c.l.b16 %v1789
    %v1854 = vunpack.c.l.b16 %v1790
    %v1855 = vunpack.c.l.b16 %v1791
    %v1856 = vunpack.c.l.b16 %v1792
    %v1857 = vunpack.c.l.b16 %v1793
    %v1858 = vunpack.c.l.b16 %v1794
    %v1859 = vunpack.c.l.b16 %v1795
    %v1860 = vunpack.c.l.b16 %v1796
    %v1861 = vunpack.c.l.b16 %v1797
    %v1862 = vunpack.c.l.b16 %v1798
    %v1863 = vunpack.c.l.b16 %v1799
    %v1864 = vunpack.c.l.b16 %v1800
    %v1865 = vunpack.c.l.b16 %v1801
    %v1866 = vunpack.c.l.b16 %v1802
    %v1867 = vunpack.c.l.b16 %v1803
    %v1868 = vunpack.c.l.b16 %v1804
    %v1869 = vunpack.c.l.b16 %v1805
    %v1870 = vunpack.c.l.b16 %v1806
    %v1871 = vpack.c.b16 %v1840, %v1839
    %v1872 = vpack.c.b16 %v1842, %v1841
    %v1873 = vpack.c.b16 %v1844, %v1843
    %v1874 = vpack.c.b16 %v1846, %v1845
    %v1875 = vpack.c.b16 %v1848, %v1847
    %v1876 = vpack.c.b16 %v1850, %v1849
    %v1877 = vpack.c.b16 %v1852, %v1851
    %v1878 = vpack.c.b16 %v1854, %v1853
    %v1879 = vpack.c.b16 %v1856, %v1855
    %v1880 = vpack.c.b16 %v1858, %v1857
    %v1881 = vpack.c.b16 %v1860, %v1859
    %v1882 = vpack.c.b16 %v1862, %v1861
    %v1883 = vpack.c.b16 %v1864, %v1863
    %v1884 = vpack.c.b16 %v1866, %v1865
    %v1885 = vpack.c.b16 %v1868, %v1867
    %v1886 = vpack.c.b16 %v1870, %v1869
    %1903 = vmatprep.subr.bf16.mxu0 0
    %1904 = vmatpush1.bf16.msra.mxu0 %v1871
    %1905 = vmatprep.subr.bf16.mxu0 0
    %1906 = vmatpush1.bf16.msra.mxu0 %v1872
    %1907 = vmatprep.subr.bf16.mxu0 0
    %1908 = vmatpush1.bf16.msra.mxu0 %v1873
    %1909 = vmatprep.subr.bf16.mxu0 0
    %1910 = vmatpush1.bf16.msra.mxu0 %v1874
    %1911 = vmatprep.subr.bf16.mxu0 0
    %1912 = vmatpush1.bf16.msra.mxu0 %v1875
    %1913 = vmatprep.subr.bf16.mxu0 0
    %1914 = vmatpush1.bf16.msra.mxu0 %v1876
    %1915 = vmatprep.subr.bf16.mxu0 0
    %1916 = vmatpush1.bf16.msra.mxu0 %v1877
    %1917 = vmatprep.subr.bf16.mxu0 0
    %1918 = vmatpush1.bf16.msra.mxu0 %v1878
    %1919 = vmatprep.subr.bf16.mxu0 0
    %1920 = vmatpush1.bf16.msra.mxu0 %v1879
    %1921 = vmatprep.subr.bf16.mxu0 0
    %1922 = vmatpush1.bf16.msra.mxu0 %v1880
    %1923 = vmatprep.subr.bf16.mxu0 0
    %1924 = vmatpush1.bf16.msra.mxu0 %v1881
    %1925 = vmatprep.subr.bf16.mxu0 0
    %1926 = vmatpush1.bf16.msra.mxu0 %v1882
    %1927 = vmatprep.subr.bf16.mxu0 0
    %1928 = vmatpush1.bf16.msra.mxu0 %v1883
    %1929 = vmatprep.subr.bf16.mxu0 0
    %1930 = vmatpush1.bf16.msra.mxu0 %v1884
    %1931 = vmatprep.subr.bf16.mxu0 0
    %1932 = vmatpush1.bf16.msra.mxu0 %v1885
    %1933 = vmatprep.subr.bf16.mxu0 0
    %1934 = vmatpush1.bf16.msra.mxu0 %v1886
    %1935 = vmatprep.mubr.bf16.mxu0 %v1773
    %1936 = vmatmul.mubr.bf16.gmra.mrb[0].mxu0 %v1772
    %v1937 = vpop.f32.mrb[0].mxu0
    %v1938 = vadd.f32 0.0, %v1937
    %v1939 = vpop.f32.mrb[0].mxu0
    %v1940 = vpop.f32.mrb[0].mxu0
    %v1941 = vpop.f32.mrb[0].mxu0
    %1942 = vdwg.mxu0
    %v1943 = vadd.f32 %v1771, %v1938
    %s1944 = scalar_lea.vmem [#allocation5], 640
    %v1945 = vld [vmem:[%s1944] sm:$0xf]
    %v1946 = vld [vmem:[%s1944 + $0x4] sm:$0xf]
    %v1947 = vld [vmem:[%s1944 + $0x8] sm:$0xf]
    %v1948 = vld [vmem:[%s1944 + $0xc] sm:$0xf]
    %v1949 = vld [vmem:[%s1944 + $0x10] sm:$0xf]
    %v1950 = vld [vmem:[%s1944 + $0x14] sm:$0xf]
    %v1951 = vld [vmem:[%s1944 + $0x18] sm:$0xf]
    %v1952 = vld [vmem:[%s1944 + $0x1c] sm:$0xf]
    %v1953 = vld [vmem:[%s1944 + $0x20] sm:$0xf]
    %v1954 = vld [vmem:[%s1944 + $0x24] sm:$0xf]
    %v1955 = vld [vmem:[%s1944 + $0x28] sm:$0xf]
    %v1956 = vld [vmem:[%s1944 + $0x2c] sm:$0xf]
    %v1957 = vld [vmem:[%s1944 + $0x30] sm:$0xf]
    %v1958 = vld [vmem:[%s1944 + $0x34] sm:$0xf]
    %v1959 = vld [vmem:[%s1944 + $0x38] sm:$0xf]
    %v1960 = vld [vmem:[%s1944 + $0x3c] sm:$0xf]
    %v1961 = vld [vmem:[%s1944 + $0x40] sm:$0xf]
    %v1962 = vld [vmem:[%s1944 + $0x44] sm:$0xf]
    %v1963 = vld [vmem:[%s1944 + $0x48] sm:$0xf]
    %v1964 = vld [vmem:[%s1944 + $0x4c] sm:$0xf]
    %v1965 = vld [vmem:[%s1944 + $0x50] sm:$0xf]
    %v1966 = vld [vmem:[%s1944 + $0x54] sm:$0xf]
    %v1967 = vld [vmem:[%s1944 + $0x58] sm:$0xf]
    %v1968 = vld [vmem:[%s1944 + $0x5c] sm:$0xf]
    %v1969 = vld [vmem:[%s1944 + $0x60] sm:$0xf]
    %v1970 = vld [vmem:[%s1944 + $0x64] sm:$0xf]
    %v1971 = vld [vmem:[%s1944 + $0x68] sm:$0xf]
    %v1972 = vld [vmem:[%s1944 + $0x6c] sm:$0xf]
    %v1973 = vld [vmem:[%s1944 + $0x70] sm:$0xf]
    %v1974 = vld [vmem:[%s1944 + $0x74] sm:$0xf]
    %v1975 = vld [vmem:[%s1944 + $0x78] sm:$0xf]
    %v1976 = vld [vmem:[%s1944 + $0x7c] sm:$0xf]
    %v1979 = vrot.slane %v1772, 1
    %v1980 = vrot.slane %v1773, 1
    %v2015 = vunpack.c.l.b16 %v1945
    %v2016 = vunpack.c.l.b16 %v1946
    %v2017 = vunpack.c.l.b16 %v1947
    %v2018 = vunpack.c.l.b16 %v1948
    %v2019 = vunpack.c.l.b16 %v1949
    %v2020 = vunpack.c.l.b16 %v1950
    %v2021 = vunpack.c.l.b16 %v1951
    %v2022 = vunpack.c.l.b16 %v1952
    %v2023 = vunpack.c.l.b16 %v1953
    %v2024 = vunpack.c.l.b16 %v1954
    %v2025 = vunpack.c.l.b16 %v1955
    %v2026 = vunpack.c.l.b16 %v1956
    %v2027 = vunpack.c.l.b16 %v1957
    %v2028 = vunpack.c.l.b16 %v1958
    %v2029 = vunpack.c.l.b16 %v1959
    %v2030 = vunpack.c.l.b16 %v1960
    %v2031 = vunpack.c.l.b16 %v1961
    %v2032 = vunpack.c.l.b16 %v1962
    %v2033 = vunpack.c.l.b16 %v1963
    %v2034 = vunpack.c.l.b16 %v1964
    %v2035 = vunpack.c.l.b16 %v1965
    %v2036 = vunpack.c.l.b16 %v1966
    %v2037 = vunpack.c.l.b16 %v1967
    %v2038 = vunpack.c.l.b16 %v1968
    %v2039 = vunpack.c.l.b16 %v1969
    %v2040 = vunpack.c.l.b16 %v1970
    %v2041 = vunpack.c.l.b16 %v1971
    %v2042 = vunpack.c.l.b16 %v1972
    %v2043 = vunpack.c.l.b16 %v1973
    %v2044 = vunpack.c.l.b16 %v1974
    %v2045 = vunpack.c.l.b16 %v1975
    %v2046 = vunpack.c.l.b16 %v1976
    %v2047 = vpack.c.b16 %v2016, %v2015
    %v2048 = vpack.c.b16 %v2018, %v2017
    %v2049 = vpack.c.b16 %v2020, %v2019
    %v2050 = vpack.c.b16 %v2022, %v2021
    %v2051 = vpack.c.b16 %v2024, %v2023
    %v2052 = vpack.c.b16 %v2026, %v2025
    %v2053 = vpack.c.b16 %v2028, %v2027
    %v2054 = vpack.c.b16 %v2030, %v2029
    %v2055 = vpack.c.b16 %v2032, %v2031
    %v2056 = vpack.c.b16 %v2034, %v2033
    %v2057 = vpack.c.b16 %v2036, %v2035
    %v2058 = vpack.c.b16 %v2038, %v2037
    %v2059 = vpack.c.b16 %v2040, %v2039
    %v2060 = vpack.c.b16 %v2042, %v2041
    %v2061 = vpack.c.b16 %v2044, %v2043
    %v2062 = vpack.c.b16 %v2046, %v2045
    %2079 = vmatprep.subr.bf16.mxu0 0
    %2080 = vmatpush1.bf16.msra.mxu0 %v2047
    %2081 = vmatprep.subr.bf16.mxu0 0
    %2082 = vmatpush1.bf16.msra.mxu0 %v2048
    %2083 = vmatprep.subr.bf16.mxu0 0
    %2084 = vmatpush1.bf16.msra.mxu0 %v2049
    %2085 = vmatprep.subr.bf16.mxu0 0
    %2086 = vmatpush1.bf16.msra.mxu0 %v2050
    %2087 = vmatprep.subr.bf16.mxu0 0
    %2088 = vmatpush1.bf16.msra.mxu0 %v2051
    %2089 = vmatprep.subr.bf16.mxu0 0
    %2090 = vmatpush1.bf16.msra.mxu0 %v2052
    %2091 = vmatprep.subr.bf16.mxu0 0
    %2092 = vmatpush1.bf16.msra.mxu0 %v2053
    %2093 = vmatprep.subr.bf16.mxu0 0
    %2094 = vmatpush1.bf16.msra.mxu0 %v2054
    %2095 = vmatprep.subr.bf16.mxu0 0
    %2096 = vmatpush1.bf16.msra.mxu0 %v2055
    %2097 = vmatprep.subr.bf16.mxu0 0
    %2098 = vmatpush1.bf16.msra.mxu0 %v2056
    %2099 = vmatprep.subr.bf16.mxu0 0
    %2100 = vmatpush1.bf16.msra.mxu0 %v2057
    %2101 = vmatprep.subr.bf16.mxu0 0
    %2102 = vmatpush1.bf16.msra.mxu0 %v2058
    %2103 = vmatprep.subr.bf16.mxu0 0
    %2104 = vmatpush1.bf16.msra.mxu0 %v2059
    %2105 = vmatprep.subr.bf16.mxu0 0
    %2106 = vmatpush1.bf16.msra.mxu0 %v2060
    %2107 = vmatprep.subr.bf16.mxu0 0
    %2108 = vmatpush1.bf16.msra.mxu0 %v2061
    %2109 = vmatprep.subr.bf16.mxu0 0
    %2110 = vmatpush1.bf16.msra.mxu0 %v2062
    %2111 = vmatprep.mubr.bf16.mxu0 %v1980
    %2112 = vmatmul.mubr.bf16.gmra.mrb[0].mxu0 %v1979
    %v2113 = vpop.f32.mrb[0].mxu0
    %v2114 = vadd.f32 0.0, %v2113
    %v2115 = vpop.f32.mrb[0].mxu0
    %v2116 = vpop.f32.mrb[0].mxu0
    %v2117 = vpop.f32.mrb[0].mxu0
    %2118 = vdwg.mxu0
    %v2119 = vadd.f32 %v1943, %v2114
    %s2120 = scalar_lea.vmem [#allocation5], 768
    %v2121 = vld [vmem:[%s2120] sm:$0xf]
    %v2122 = vld [vmem:[%s2120 + $0x4] sm:$0xf]
    %v2123 = vld [vmem:[%s2120 + $0x8] sm:$0xf]
    %v2124 = vld [vmem:[%s2120 + $0xc] sm:$0xf]
    %v2125 = vld [vmem:[%s2120 + $0x10] sm:$0xf]
    %v2126 = vld [vmem:[%s2120 + $0x14] sm:$0xf]
    %v2127 = vld [vmem:[%s2120 + $0x18] sm:$0xf]
    %v2128 = vld [vmem:[%s2120 + $0x1c] sm:$0xf]
    %v2129 = vld [vmem:[%s2120 + $0x20] sm:$0xf]
    %v2130 = vld [vmem:[%s2120 + $0x24] sm:$0xf]
    %v2131 = vld [vmem:[%s2120 + $0x28] sm:$0xf]
    %v2132 = vld [vmem:[%s2120 + $0x2c] sm:$0xf]
    %v2133 = vld [vmem:[%s2120 + $0x30] sm:$0xf]
    %v2134 = vld [vmem:[%s2120 + $0x34] sm:$0xf]
    %v2135 = vld [vmem:[%s2120 + $0x38] sm:$0xf]
    %v2136 = vld [vmem:[%s2120 + $0x3c] sm:$0xf]
    %v2137 = vld [vmem:[%s2120 + $0x40] sm:$0xf]
    %v2138 = vld [vmem:[%s2120 + $0x44] sm:$0xf]
    %v2139 = vld [vmem:[%s2120 + $0x48] sm:$0xf]
    %v2140 = vld [vmem:[%s2120 + $0x4c] sm:$0xf]
    %v2141 = vld [vmem:[%s2120 + $0x50] sm:$0xf]
    %v2142 = vld [vmem:[%s2120 + $0x54] sm:$0xf]
    %v2143 = vld [vmem:[%s2120 + $0x58] sm:$0xf]
    %v2144 = vld [vmem:[%s2120 + $0x5c] sm:$0xf]
    %v2145 = vld [vmem:[%s2120 + $0x60] sm:$0xf]
    %v2146 = vld [vmem:[%s2120 + $0x64] sm:$0xf]
    %v2147 = vld [vmem:[%s2120 + $0x68] sm:$0xf]
    %v2148 = vld [vmem:[%s2120 + $0x6c] sm:$0xf]
    %v2149 = vld [vmem:[%s2120 + $0x70] sm:$0xf]
    %v2150 = vld [vmem:[%s2120 + $0x74] sm:$0xf]
    %v2151 = vld [vmem:[%s2120 + $0x78] sm:$0xf]
    %v2152 = vld [vmem:[%s2120 + $0x7c] sm:$0xf]
    %v2153 = vrot.slane %v1772, 2
    %v2154 = vrot.slane %v1773, 2
    %v2189 = vunpack.c.l.b16 %v2121
    %v2190 = vunpack.c.l.b16 %v2122
    %v2191 = vunpack.c.l.b16 %v2123
    %v2192 = vunpack.c.l.b16 %v2124
    %v2193 = vunpack.c.l.b16 %v2125
    %v2194 = vunpack.c.l.b16 %v2126
    %v2195 = vunpack.c.l.b16 %v2127
    %v2196 = vunpack.c.l.b16 %v2128
    %v2197 = vunpack.c.l.b16 %v2129
    %v2198 = vunpack.c.l.b16 %v2130
    %v2199 = vunpack.c.l.b16 %v2131
    %v2200 = vunpack.c.l.b16 %v2132
    %v2201 = vunpack.c.l.b16 %v2133
    %v2202 = vunpack.c.l.b16 %v2134
    %v2203 = vunpack.c.l.b16 %v2135
    %v2204 = vunpack.c.l.b16 %v2136
    %v2205 = vunpack.c.l.b16 %v2137
    %v2206 = vunpack.c.l.b16 %v2138
    %v2207 = vunpack.c.l.b16 %v2139
    %v2208 = vunpack.c.l.b16 %v2140
    %v2209 = vunpack.c.l.b16 %v2141
    %v2210 = vunpack.c.l.b16 %v2142
    %v2211 = vunpack.c.l.b16 %v2143
    %v2212 = vunpack.c.l.b16 %v2144
    %v2213 = vunpack.c.l.b16 %v2145
    %v2214 = vunpack.c.l.b16 %v2146
    %v2215 = vunpack.c.l.b16 %v2147
    %v2216 = vunpack.c.l.b16 %v2148
    %v2217 = vunpack.c.l.b16 %v2149
    %v2218 = vunpack.c.l.b16 %v2150
    %v2219 = vunpack.c.l.b16 %v2151
    %v2220 = vunpack.c.l.b16 %v2152
    %v2221 = vpack.c.b16 %v2190, %v2189
    %v2222 = vpack.c.b16 %v2192, %v2191
    %v2223 = vpack.c.b16 %v2194, %v2193
    %v2224 = vpack.c.b16 %v2196, %v2195
    %v2225 = vpack.c.b16 %v2198, %v2197
    %v2226 = vpack.c.b16 %v2200, %v2199
    %v2227 = vpack.c.b16 %v2202, %v2201
    %v2228 = vpack.c.b16 %v2204, %v2203
    %v2229 = vpack.c.b16 %v2206, %v2205
    %v2230 = vpack.c.b16 %v2208, %v2207
    %v2231 = vpack.c.b16 %v2210, %v2209
    %v2232 = vpack.c.b16 %v2212, %v2211
    %v2233 = vpack.c.b16 %v2214, %v2213
    %v2234 = vpack.c.b16 %v2216, %v2215
    %v2235 = vpack.c.b16 %v2218, %v2217
    %v2236 = vpack.c.b16 %v2220, %v2219
    %2253 = vmatprep.subr.bf16.mxu0 0
    %2254 = vmatpush1.bf16.msra.mxu0 %v2221
    %2255 = vmatprep.subr.bf16.mxu0 0
    %2256 = vmatpush1.bf16.msra.mxu0 %v2222
    %2257 = vmatprep.subr.bf16.mxu0 0
    %2258 = vmatpush1.bf16.msra.mxu0 %v2223
    %2259 = vmatprep.subr.bf16.mxu0 0
    %2260 = vmatpush1.bf16.msra.mxu0 %v2224
    %2261 = vmatprep.subr.bf16.mxu0 0
    %2262 = vmatpush1.bf16.msra.mxu0 %v2225
    %2263 = vmatprep.subr.bf16.mxu0 0
    %2264 = vmatpush1.bf16.msra.mxu0 %v2226
    %2265 = vmatprep.subr.bf16.mxu0 0
    %2266 = vmatpush1.bf16.msra.mxu0 %v2227
    %2267 = vmatprep.subr.bf16.mxu0 0
    %2268 = vmatpush1.bf16.msra.mxu0 %v2228
    %2269 = vmatprep.subr.bf16.mxu0 0
    %2270 = vmatpush1.bf16.msra.mxu0 %v2229
    %2271 = vmatprep.subr.bf16.mxu0 0
    %2272 = vmatpush1.bf16.msra.mxu0 %v2230
    %2273 = vmatprep.subr.bf16.mxu0 0
    %2274 = vmatpush1.bf16.msra.mxu0 %v2231
    %2275 = vmatprep.subr.bf16.mxu0 0
    %2276 = vmatpush1.bf16.msra.mxu0 %v2232
    %2277 = vmatprep.subr.bf16.mxu0 0
    %2278 = vmatpush1.bf16.msra.mxu0 %v2233
    %2279 = vmatprep.subr.bf16.mxu0 0
    %2280 = vmatpush1.bf16.msra.mxu0 %v2234
    %2281 = vmatprep.subr.bf16.mxu0 0
    %2282 = vmatpush1.bf16.msra.mxu0 %v2235
    %2283 = vmatprep.subr.bf16.mxu0 0
    %2284 = vmatpush1.bf16.msra.mxu0 %v2236
    %2285 = vmatprep.mubr.bf16.mxu0 %v2154
    %2286 = vmatmul.mubr.bf16.gmra.mrb[0].mxu0 %v2153
    %v2287 = vpop.f32.mrb[0].mxu0
    %v2288 = vadd.f32 0.0, %v2287
    %v2289 = vpop.f32.mrb[0].mxu0
    %v2290 = vpop.f32.mrb[0].mxu0
    %v2291 = vpop.f32.mrb[0].mxu0
    %2292 = vdwg.mxu0
    %v2293 = vadd.f32 %v2119, %v2288
    %s2294 = scalar_lea.vmem [#allocation5], 896
    %v2295 = vld [vmem:[%s2294] sm:$0xf]
    %v2296 = vld [vmem:[%s2294 + $0x4] sm:$0xf]
    %v2297 = vld [vmem:[%s2294 + $0x8] sm:$0xf]
    %v2298 = vld [vmem:[%s2294 + $0xc] sm:$0xf]
    %v2299 = vld [vmem:[%s2294 + $0x10] sm:$0xf]
    %v2300 = vld [vmem:[%s2294 + $0x14] sm:$0xf]
    %v2301 = vld [vmem:[%s2294 + $0x18] sm:$0xf]
    %v2302 = vld [vmem:[%s2294 + $0x1c] sm:$0xf]
    %v2303 = vld [vmem:[%s2294 + $0x20] sm:$0xf]
    %v2304 = vld [vmem:[%s2294 + $0x24] sm:$0xf]
    %v2305 = vld [vmem:[%s2294 + $0x28] sm:$0xf]
    %v2306 = vld [vmem:[%s2294 + $0x2c] sm:$0xf]
    %v2307 = vld [vmem:[%s2294 + $0x30] sm:$0xf]
    %v2308 = vld [vmem:[%s2294 + $0x34] sm:$0xf]
    %v2309 = vld [vmem:[%s2294 + $0x38] sm:$0xf]
    %v2310 = vld [vmem:[%s2294 + $0x3c] sm:$0xf]
    %v2311 = vld [vmem:[%s2294 + $0x40] sm:$0xf]
    %v2312 = vld [vmem:[%s2294 + $0x44] sm:$0xf]
    %v2313 = vld [vmem:[%s2294 + $0x48] sm:$0xf]
    %v2314 = vld [vmem:[%s2294 + $0x4c] sm:$0xf]
    %v2315 = vld [vmem:[%s2294 + $0x50] sm:$0xf]
    %v2316 = vld [vmem:[%s2294 + $0x54] sm:$0xf]
    %v2317 = vld [vmem:[%s2294 + $0x58] sm:$0xf]
    %v2318 = vld [vmem:[%s2294 + $0x5c] sm:$0xf]
    %v2319 = vld [vmem:[%s2294 + $0x60] sm:$0xf]
    %v2320 = vld [vmem:[%s2294 + $0x64] sm:$0xf]
    %v2321 = vld [vmem:[%s2294 + $0x68] sm:$0xf]
    %v2322 = vld [vmem:[%s2294 + $0x6c] sm:$0xf]
    %v2323 = vld [vmem:[%s2294 + $0x70] sm:$0xf]
    %v2324 = vld [vmem:[%s2294 + $0x74] sm:$0xf]
    %v2325 = vld [vmem:[%s2294 + $0x78] sm:$0xf]
    %v2326 = vld [vmem:[%s2294 + $0x7c] sm:$0xf]
    %v2327 = vrot.slane %v1772, 3
    %v2328 = vrot.slane %v1773, 3
    %v2363 = vunpack.c.l.b16 %v2295
    %v2364 = vunpack.c.l.b16 %v2296
    %v2365 = vunpack.c.l.b16 %v2297
    %v2366 = vunpack.c.l.b16 %v2298
    %v2367 = vunpack.c.l.b16 %v2299
    %v2368 = vunpack.c.l.b16 %v2300
    %v2369 = vunpack.c.l.b16 %v2301
    %v2370 = vunpack.c.l.b16 %v2302
    %v2371 = vunpack.c.l.b16 %v2303
    %v2372 = vunpack.c.l.b16 %v2304
    %v2373 = vunpack.c.l.b16 %v2305
    %v2374 = vunpack.c.l.b16 %v2306
    %v2375 = vunpack.c.l.b16 %v2307
    %v2376 = vunpack.c.l.b16 %v2308
    %v2377 = vunpack.c.l.b16 %v2309
    %v2378 = vunpack.c.l.b16 %v2310
    %v2379 = vunpack.c.l.b16 %v2311
    %v2380 = vunpack.c.l.b16 %v2312
    %v2381 = vunpack.c.l.b16 %v2313
    %v2382 = vunpack.c.l.b16 %v2314
    %v2383 = vunpack.c.l.b16 %v2315
    %v2384 = vunpack.c.l.b16 %v2316
    %v2385 = vunpack.c.l.b16 %v2317
    %v2386 = vunpack.c.l.b16 %v2318
    %v2387 = vunpack.c.l.b16 %v2319
    %v2388 = vunpack.c.l.b16 %v2320
    %v2389 = vunpack.c.l.b16 %v2321
    %v2390 = vunpack.c.l.b16 %v2322
    %v2391 = vunpack.c.l.b16 %v2323
    %v2392 = vunpack.c.l.b16 %v2324
    %v2393 = vunpack.c.l.b16 %v2325
    %v2394 = vunpack.c.l.b16 %v2326
    %v2395 = vpack.c.b16 %v2364, %v2363
    %v2396 = vpack.c.b16 %v2366, %v2365
    %v2397 = vpack.c.b16 %v2368, %v2367
    %v2398 = vpack.c.b16 %v2370, %v2369
    %v2399 = vpack.c.b16 %v2372, %v2371
    %v2400 = vpack.c.b16 %v2374, %v2373
    %v2401 = vpack.c.b16 %v2376, %v2375
    %v2402 = vpack.c.b16 %v2378, %v2377
    %v2403 = vpack.c.b16 %v2380, %v2379
    %v2404 = vpack.c.b16 %v2382, %v2381
    %v2405 = vpack.c.b16 %v2384, %v2383
    %v2406 = vpack.c.b16 %v2386, %v2385
    %v2407 = vpack.c.b16 %v2388, %v2387
    %v2408 = vpack.c.b16 %v2390, %v2389
    %v2409 = vpack.c.b16 %v2392, %v2391
    %v2410 = vpack.c.b16 %v2394, %v2393
    %2427 = vmatprep.subr.bf16.mxu0 0
    %2428 = vmatpush1.bf16.msra.mxu0 %v2395
    %2429 = vmatprep.subr.bf16.mxu0 0
    %2430 = vmatpush1.bf16.msra.mxu0 %v2396
    %2431 = vmatprep.subr.bf16.mxu0 0
    %2432 = vmatpush1.bf16.msra.mxu0 %v2397
    %2433 = vmatprep.subr.bf16.mxu0 0
    %2434 = vmatpush1.bf16.msra.mxu0 %v2398
    %2435 = vmatprep.subr.bf16.mxu0 0
    %2436 = vmatpush1.bf16.msra.mxu0 %v2399
    %2437 = vmatprep.subr.bf16.mxu0 0
    %2438 = vmatpush1.bf16.msra.mxu0 %v2400
    %2439 = vmatprep.subr.bf16.mxu0 0
    %2440 = vmatpush1.bf16.msra.mxu0 %v2401
    %2441 = vmatprep.subr.bf16.mxu0 0
    %2442 = vmatpush1.bf16.msra.mxu0 %v2402
    %2443 = vmatprep.subr.bf16.mxu0 0
    %2444 = vmatpush1.bf16.msra.mxu0 %v2403
    %2445 = vmatprep.subr.bf16.mxu0 0
    %2446 = vmatpush1.bf16.msra.mxu0 %v2404
    %2447 = vmatprep.subr.bf16.mxu0 0
    %2448 = vmatpush1.bf16.msra.mxu0 %v2405
    %2449 = vmatprep.subr.bf16.mxu0 0
    %2450 = vmatpush1.bf16.msra.mxu0 %v2406
    %2451 = vmatprep.subr.bf16.mxu0 0
    %2452 = vmatpush1.bf16.msra.mxu0 %v2407
    %2453 = vmatprep.subr.bf16.mxu0 0
    %2454 = vmatpush1.bf16.msra.mxu0 %v2408
    %2455 = vmatprep.subr.bf16.mxu0 0
    %2456 = vmatpush1.bf16.msra.mxu0 %v2409
    %2457 = vmatprep.subr.bf16.mxu0 0
    %2458 = vmatpush1.bf16.msra.mxu0 %v2410
    %2459 = vmatprep.mubr.bf16.mxu0 %v2328
    %2460 = vmatmul.mubr.bf16.gmra.mrb[0].mxu0 %v2327
    %v2461 = vpop.f32.mrb[0].mxu0
    %v2462 = vadd.f32 0.0, %v2461
    %v2463 = vpop.f32.mrb[0].mxu0
    %v2464 = vpop.f32.mrb[0].mxu0
    %v2465 = vpop.f32.mrb[0].mxu0
    %2466 = vdwg.mxu0
    %v2467 = vadd.f32 %v2293, %v2462
    %v2468 = vld [vmem:[%s6] sm:$0x1]
    %v2470 = vlaneseq
    %v2471 = vshrl.u32 %v2470, 7
    %v2472 = vsub.s32 0, %v2471
    %v2473 = vrot.slane %v2468, %v2472
    %v2475 = vadd.f32 %v2467, %v2473
    %v2476 = vmax.f32 %v2475, 0.0
    %2477 = vst [vmem:[#allocation7] sm:$0x3] %v2476
    // Predicated region
    $region38: #{forward.1} parent=1 // pred_check
      _
    $region39: #{forward.1} parent=1 // pred_check_branch
      %2479 = sbr.rel (0) target = $region41
    $region40: #{forward.1} parent=1 // pred_region
      %s2481 = ssub.s32 32, 32
      %2482 = vsyncadd [#allocation4], %s2481
      %s2484 = sshll.u32 [#allocation7], 4
      %s2485 = int_to_ptr.vmem [resolvable:$true] %s2484
      %2487 = dma.vmem_to_hbm [thread:$0]  %s2485, 32, %s7, [#allocation4]
    $region41: #{forward.1} parent=1 // pred_fallthru
      _
    // Predicated region
    $region42: #{forward.1} parent=1 // pred_check
      _
    $region43: #{forward.1} parent=1 // pred_check_branch
      %2489 = sbr.rel (0) target = $region45
    $region44: #{forward.1} parent=1 // pred_region
      %2490 = dma.done [#allocation4], 32
    $region45: #{forward.1} parent=1 // pred_fallthru
      _
    %2491 = vsyncpa [#allocation3], 1
    %2492 = vsyncpa [#allocation6], 1
    %2493 = vsyncpa [#allocation4], 1

</llo_original>
